<compile_context>
chip_gen: v7x
topology: tpu7x:2x2x1
jax: 0.10.0
libtpu: 0.0.40
codegen_flags: <defaults>
</compile_context>

<pallas_src>
import functools

import jax
import jax.numpy as jnp
import numpy as np
from jax import lax
from jax.experimental import pallas as pl
from jax.experimental.pallas import tpu as pltpu

_BN_EPS = 1e-5


def _pad8(c):
    return ((c + 7) // 8) * 8


def _dense_block_kernel(*refs, cfg):
    num_convs, w_img, mrep = cfg

    x_ref = refs[0]                                     # (c0p, s)
    masks_ref = refs[1]                                 # (9*mrep, s) pre-broadcast
    w_refs = refs[2:2 + num_convs]                      # (coutp, 9*(c0p + i*coutp))
    b_refs = refs[2 + num_convs:2 + 2 * num_convs]      # (coutp, 1)
    out_ref = refs[2 + 2 * num_convs]                   # (c_total_p, s)
    pcol_ref = refs[3 + 2 * num_convs]                  # (pcol_rows, s) im2col

    s = x_ref.shape[1]
    tap_off = [(dy - 1) * w_img + (dx - 1) for dy in range(3) for dx in range(3)]

    def tap_of(y, t, cin_new):
        # Shifted copy of y for tap t: XLU lane rotation + pre-broadcast mask.
        # The mask zeros exactly the positions that wrap or leak across rows /
        # images, realizing the conv's zero padding.
        shifted = pltpu.roll(y, (-tap_off[t]) % s, 1)
        return shifted * masks_ref[mrep * t:mrep * t + cin_new, :]

    new = x_ref[...]      # raw channels appended by the previous step
    c_off = 0             # channels already materialized in the output
    for blk in range(num_convs):
        cin_new = new.shape[0]
        is_last = blk == num_convs - 1

        # Raw new channels -> their slice of the output (the torch.cat).
        out_ref[c_off:c_off + cin_new, :] = new

        # Incremental BatchNorm (batch stats, biased var, gamma=1, beta=0) +
        # ReLU, one-pass stats: old channels' statistics never change, so only
        # the newly appended channels are normalized.
        m1 = jnp.mean(new, axis=1, keepdims=True)
        m2 = jnp.mean(new * new, axis=1, keepdims=True)
        y = jnp.maximum((new - m1) * lax.rsqrt(m2 - m1 * m1 + _BN_EPS), 0.0)

        w_blk = w_refs[blk]
        if not is_last:
            # Append this group's 9 taps to the im2col scratch (8-aligned row
            # offsets), then one MXU matmul over everything seen so far.
            col0 = 9 * c_off
            for t in range(9):
                pcol_ref[col0 + t * cin_new:col0 + (t + 1) * cin_new, :] = (
                    tap_of(y, t, cin_new))
            c_off += cin_new
            acc = jnp.dot(w_blk[...], pcol_ref[0:9 * c_off, :],
                          preferred_element_type=jnp.float32)
        else:
            # Last block: its taps are never reused by a later block, so skip
            # the pcol stores and feed the MXU directly from values.
            k_old = 9 * c_off
            if k_old > 0:
                acc = jnp.dot(w_blk[:, 0:k_old], pcol_ref[0:k_old, :],
                              preferred_element_type=jnp.float32)
            else:
                acc = jnp.zeros((w_blk.shape[0], s), jnp.float32)
            for t in range(9):
                tap = tap_of(y, t, cin_new)
                acc += jnp.dot(
                    w_blk[:, k_old + t * cin_new:k_old + (t + 1) * cin_new],
                    tap, preferred_element_type=jnp.float32)
            c_off += cin_new

        new = acc + b_refs[blk][...]                    # (coutp, s)

    out_ref[c_off:c_off + new.shape[0], :] = new        # final block's Y


def dense_block_forward(x_nchw, params):
    """DenseBlock forward. x_nchw: (N, C0, H, W); params: list of (w_hwio, b)."""
    n, c0, h, w = x_nchw.shape
    num_convs = len(params)
    cout = int(params[0][0].shape[-1])
    s = n * h * w
    c0p = _pad8(c0)
    coutp = _pad8(cout)
    mrep = max(c0p, coutp)
    c_total = c0 + num_convs * cout
    c_total_p = c0p + num_convs * coutp
    # Only groups reused by a later block are ever stored to the im2col scratch.
    pcol_rows = 9 * (c0p + (num_convs - 2) * coutp) if num_convs > 1 else 8

    # Channels on sublanes (padded to a multiple of 8), flattened (n, h, w)
    # spatial on lanes (lane-dense).
    x2d = jnp.transpose(x_nchw, (1, 0, 2, 3)).reshape(c0, s).astype(jnp.float32)
    if c0p > c0:
        x2d = jnp.concatenate(
            [x2d, jnp.zeros((c0p - c0, s), jnp.float32)], axis=0)

    # Static per-tap boundary masks, pre-broadcast along sublanes so the kernel
    # does plain aligned loads (no in-kernel broadcast_in_dim per tap).
    hh, ww = np.meshgrid(np.arange(h), np.arange(w), indexing="ij")
    masks_np = np.zeros((9, n, h, w), np.float32)
    for t in range(9):
        dy, dx = divmod(t, 3)
        valid = ((hh + dy - 1 >= 0) & (hh + dy - 1 < h) &
                 (ww + dx - 1 >= 0) & (ww + dx - 1 < w))
        masks_np[t] = valid[None].astype(np.float32)
    masks_np = np.broadcast_to(masks_np.reshape(9, 1, s), (9, mrep, s))
    masks = jnp.asarray(np.ascontiguousarray(masks_np).reshape(9 * mrep, s))

    # Pack conv weights to the im2col row order (group-major, tap-major within
    # group, channel within tap), padding each channel group to 8 sublanes and
    # the output channels to a multiple of 8 with zero rows.
    g_start = [0] + [c0 + j * cout for j in range(num_convs)]
    g_size = [c0] + [cout] * num_convs
    g_size_p = [c0p] + [coutp] * num_convs
    w_packed, b_packed = [], []
    for i, (w_hwio, b) in enumerate(params):
        w_hwio = w_hwio.astype(jnp.float32)
        rows = []
        for g in range(i + 1):
            gs, gn, gp = g_start[g], g_size[g], g_size_p[g]
            for t in range(9):
                dy, dx = divmod(t, 3)
                blk_rows = w_hwio[dy, dx, gs:gs + gn, :]        # (gn, cout)
                if gp > gn:
                    blk_rows = jnp.concatenate(
                        [blk_rows, jnp.zeros((gp - gn, cout), jnp.float32)], 0)
                rows.append(blk_rows)
        wp = jnp.concatenate(rows, axis=0).T        # (cout, 9*(c0p + i*coutp))
        bp = b.astype(jnp.float32).reshape(cout, 1)
        if coutp > cout:
            wp = jnp.concatenate(
                [wp, jnp.zeros((coutp - cout, wp.shape[1]), jnp.float32)], 0)
            bp = jnp.concatenate(
                [bp, jnp.zeros((coutp - cout, 1), jnp.float32)], 0)
        w_packed.append(wp)
        b_packed.append(bp)

    full2d = lambda shape: pl.BlockSpec(shape, lambda i: (0, 0))
    in_specs = ([full2d((c0p, s)), full2d((9 * mrep, s))]
                + [full2d(tuple(wp.shape)) for wp in w_packed]
                + [full2d((coutp, 1)) for _ in b_packed])

    kernel = functools.partial(_dense_block_kernel, cfg=(num_convs, w, mrep))

    out2d = pl.pallas_call(
        kernel,
        out_shape=jax.ShapeDtypeStruct((c_total_p, s), jnp.float32),
        grid=(1,),
        in_specs=in_specs,
        out_specs=full2d((c_total_p, s)),
        scratch_shapes=[pltpu.VMEM((pcol_rows, s), jnp.float32)],   # im2col
        compiler_params=pltpu.CompilerParams(
            dimension_semantics=("arbitrary",)),
    )(x2d, masks, *w_packed, *b_packed)

    # Drop the channel padding and restore NCHW.
    pieces = [out2d[0:c0]]
    for j in range(num_convs):
        r0 = c0p + j * coutp
        pieces.append(out2d[r0:r0 + cout])
    out2d = jnp.concatenate(pieces, axis=0)
    return jnp.transpose(out2d.reshape(c_total, n, h, w), (1, 0, 2, 3))


def init_dense_block_params(key, num_convs, input_channels, num_channels):
    params = []
    for i in range(num_convs):
        cin = input_channels + i * num_channels
        key, kw, kb = jax.random.split(key, 3)
        wgt = (jax.random.normal(kw, (3, 3, cin, num_channels), jnp.float32)
               * (1.0 / np.sqrt(9.0 * cin)))
        b = jax.random.normal(kb, (num_channels,), jnp.float32) * 0.01
        params.append((wgt, b))
    return params


# -------------------- pure-JAX reference --------------------
def _conv_block_ref(x_nhwc, w_hwio, b):
    mean = jnp.mean(x_nhwc, axis=(0, 1, 2), keepdims=True)
    var = jnp.mean((x_nhwc - mean) ** 2, axis=(0, 1, 2), keepdims=True)
    y = jnp.maximum((x_nhwc - mean) * lax.rsqrt(var + _BN_EPS), 0.0)
    out = lax.conv_general_dilated(
        y, w_hwio, window_strides=(1, 1), padding="SAME",
        dimension_numbers=("NHWC", "HWIO", "NHWC"))
    return out + b.reshape(1, 1, 1, -1)


def _dense_block_ref(x_nchw, params):
    x = jnp.transpose(x_nchw, (0, 2, 3, 1))
    for w_hwio, b in params:
        x = jnp.concatenate([x, _conv_block_ref(x, w_hwio, b)], axis=-1)
    return jnp.transpose(x, (0, 3, 1, 2))


if __name__ == "__main__":
    num_convs = 2
    input_channels = 4
    num_channels = 8
    batch, height, width = 2, 16, 16

    key = jax.random.PRNGKey(0)
    key, kx = jax.random.split(key)
    x = jax.random.normal(kx, (batch, input_channels, height, width), jnp.float32)

    params = init_dense_block_params(key, num_convs, input_channels, num_channels)

    out = jax.block_until_ready(dense_block_forward(x, params))

    expected_channels = input_channels + num_convs * num_channels
    assert out.shape == (batch, expected_channels, height, width), out.shape

    ref = jax.block_until_ready(_dense_block_ref(x, params))
    np.testing.assert_allclose(np.asarray(out), np.asarray(ref),
                               rtol=1e-4, atol=1e-4)

    print("KERNEL_OK")
</pallas_src>

<mosaic_0001>
module attributes {stable_mosaic.version = 11 : i64} {
  func.func @_dense_block_kernel(%arg0: i32, %arg1: memref<8x512xf32, #tpu.memory_space<vmem>>, %arg2: memref<72x512xf32, #tpu.memory_space<vmem>>, %arg3: memref<8x72xf32, #tpu.memory_space<vmem>>, %arg4: memref<8x144xf32, #tpu.memory_space<vmem>>, %arg5: memref<8x1xf32, #tpu.memory_space<vmem>>, %arg6: memref<8x1xf32, #tpu.memory_space<vmem>>, %arg7: memref<24x512xf32, #tpu.memory_space<vmem>>, %arg8: memref<72x512xf32, #tpu.memory_space<vmem>>) attributes {dimension_semantics = [#tpu.dimension_semantics<arbitrary>], iteration_bounds = array<i64: 1>, scalar_prefetch = 0 : i64, scratch_operands = 1 : i64, tpu.core_type = #tpu.core_type<tc>, window_params = [{pipeline_mode = #tpu.pipeline_mode<synchronous>, transform_indices = @transform_0, window_bounds = array<i64: 8, 512>}, {pipeline_mode = #tpu.pipeline_mode<synchronous>, transform_indices = @transform_1, window_bounds = array<i64: 72, 512>}, {pipeline_mode = #tpu.pipeline_mode<synchronous>, transform_indices = @transform_2, window_bounds = array<i64: 8, 72>}, {pipeline_mode = #tpu.pipeline_mode<synchronous>, transform_indices = @transform_3, window_bounds = array<i64: 8, 144>}, {pipeline_mode = #tpu.pipeline_mode<synchronous>, transform_indices = @transform_4, window_bounds = array<i64: 8, 1>}, {pipeline_mode = #tpu.pipeline_mode<synchronous>, transform_indices = @transform_5, window_bounds = array<i64: 8, 1>}, {pipeline_mode = #tpu.pipeline_mode<synchronous>, transform_indices = @transform_6, window_bounds = array<i64: 24, 512>}]} {
    %c0 = arith.constant 0 : index
    %c0_0 = arith.constant 0 : index
    %0 = vector.load %arg1[%c0, %c0_0] : memref<8x512xf32, #tpu.memory_space<vmem>>, vector<8x512xf32>
    %c0_1 = arith.constant 0 : index
    %c0_2 = arith.constant 0 : index
    %1 = vector.load %arg7[%c0_1, %c0_2] : memref<24x512xf32, #tpu.memory_space<vmem>>, vector<8x512xf32>
    tpu.vector_store %arg7[%c0_1, %c0_2], %0 {strides = array<i32>} : memref<24x512xf32, #tpu.memory_space<vmem>>, vector<8x512xf32>,
    %cst = arith.constant dense<0.000000e+00> : vector<8xf32>
    %2 = vector.multi_reduction <add>, %0, %cst [1] : vector<8x512xf32> to vector<8xf32>
    %3 = vector.shape_cast %2 : vector<8xf32> to vector<8x1xf32>
    %cst_3 = arith.constant 5.120000e+02 : f32
    %4 = vector.broadcast %cst_3 : f32 to vector<8x1xf32>
    %5 = arith.divf %3, %4 : vector<8x1xf32>
    %6 = arith.mulf %0, %0 : vector<8x512xf32>
    %cst_4 = arith.constant dense<0.000000e+00> : vector<8xf32>
    %7 = vector.multi_reduction <add>, %6, %cst_4 [1] : vector<8x512xf32> to vector<8xf32>
    %8 = vector.shape_cast %7 : vector<8xf32> to vector<8x1xf32>
    %cst_5 = arith.constant 5.120000e+02 : f32
    %9 = vector.broadcast %cst_5 : f32 to vector<8x1xf32>
    %10 = arith.divf %8, %9 : vector<8x1xf32>
    %11 = vector.broadcast %5 : vector<8x1xf32> to vector<8x512xf32>
    %12 = arith.subf %0, %11 : vector<8x512xf32>
    %13 = arith.mulf %5, %5 : vector<8x1xf32>
    %14 = arith.subf %10, %13 : vector<8x1xf32>
    %cst_6 = arith.constant 9.99999974E-6 : f32
    %15 = vector.broadcast %cst_6 : f32 to vector<8x1xf32>
    %16 = arith.addf %14, %15 : vector<8x1xf32>
    %17 = math.rsqrt %16 : vector<8x1xf32>
    %18 = vector.broadcast %17 : vector<8x1xf32> to vector<8x512xf32>
    %19 = arith.mulf %12, %18 : vector<8x512xf32>
    %cst_7 = arith.constant 0.000000e+00 : f32
    %20 = vector.broadcast %cst_7 : f32 to vector<8x512xf32>
    %21 = arith.maximumf %19, %20 : vector<8x512xf32>
    %c17_i32 = arith.constant 17 : i32
    %22 = tpu.dynamic_rotate %21 by %c17_i32 dim 1 : vector<8x512xf32>, i32 -> vector<8x512xf32>
    %c0_8 = arith.constant 0 : index
    %c0_9 = arith.constant 0 : index
    %23 = vector.load %arg2[%c0_8, %c0_9] : memref<72x512xf32, #tpu.memory_space<vmem>>, vector<8x512xf32>
    %24 = arith.mulf %22, %23 : vector<8x512xf32>
    %c0_10 = arith.constant 0 : index
    %c0_11 = arith.constant 0 : index
    %25 = vector.load %arg8[%c0_10, %c0_11] : memref<72x512xf32, #tpu.memory_space<vmem>>, vector<8x512xf32>
    tpu.vector_store %arg8[%c0_10, %c0_11], %24 {strides = array<i32>} : memref<72x512xf32, #tpu.memory_space<vmem>>, vector<8x512xf32>,
    %c16_i32 = arith.constant 16 : i32
    %26 = tpu.dynamic_rotate %21 by %c16_i32 dim 1 : vector<8x512xf32>, i32 -> vector<8x512xf32>
    %c8 = arith.constant 8 : index
    %c0_12 = arith.constant 0 : index
    %27 = vector.load %arg2[%c8, %c0_12] : memref<72x512xf32, #tpu.memory_space<vmem>>, vector<8x512xf32>
    %28 = arith.mulf %26, %27 : vector<8x512xf32>
    %c8_13 = arith.constant 8 : index
    %c0_14 = arith.constant 0 : index
    %29 = vector.load %arg8[%c8_13, %c0_14] : memref<72x512xf32, #tpu.memory_space<vmem>>, vector<8x512xf32>
    tpu.vector_store %arg8[%c8_13, %c0_14], %28 {strides = array<i32>} : memref<72x512xf32, #tpu.memory_space<vmem>>, vector<8x512xf32>,
    %c15_i32 = arith.constant 15 : i32
    %30 = tpu.dynamic_rotate %21 by %c15_i32 dim 1 : vector<8x512xf32>, i32 -> vector<8x512xf32>
    %c16 = arith.constant 16 : index
    %c0_15 = arith.constant 0 : index
    %31 = vector.load %arg2[%c16, %c0_15] : memref<72x512xf32, #tpu.memory_space<vmem>>, vector<8x512xf32>
    %32 = arith.mulf %30, %31 : vector<8x512xf32>
    %c16_16 = arith.constant 16 : index
    %c0_17 = arith.constant 0 : index
    %33 = vector.load %arg8[%c16_16, %c0_17] : memref<72x512xf32, #tpu.memory_space<vmem>>, vector<8x512xf32>
    tpu.vector_store %arg8[%c16_16, %c0_17], %32 {strides = array<i32>} : memref<72x512xf32, #tpu.memory_space<vmem>>, vector<8x512xf32>,
    %c1_i32 = arith.constant 1 : i32
    %34 = tpu.dynamic_rotate %21 by %c1_i32 dim 1 : vector<8x512xf32>, i32 -> vector<8x512xf32>
    %c24 = arith.constant 24 : index
    %c0_18 = arith.constant 0 : index
    %35 = vector.load %arg2[%c24, %c0_18] : memref<72x512xf32, #tpu.memory_space<vmem>>, vector<8x512xf32>
    %36 = arith.mulf %34, %35 : vector<8x512xf32>
    %c24_19 = arith.constant 24 : index
    %c0_20 = arith.constant 0 : index
    %37 = vector.load %arg8[%c24_19, %c0_20] : memref<72x512xf32, #tpu.memory_space<vmem>>, vector<8x512xf32>
    tpu.vector_store %arg8[%c24_19, %c0_20], %36 {strides = array<i32>} : memref<72x512xf32, #tpu.memory_space<vmem>>, vector<8x512xf32>,
    %c0_i32 = arith.constant 0 : i32
    %38 = tpu.dynamic_rotate %21 by %c0_i32 dim 1 : vector<8x512xf32>, i32 -> vector<8x512xf32>
    %c32 = arith.constant 32 : index
    %c0_21 = arith.constant 0 : index
    %39 = vector.load %arg2[%c32, %c0_21] : memref<72x512xf32, #tpu.memory_space<vmem>>, vector<8x512xf32>
    %40 = arith.mulf %38, %39 : vector<8x512xf32>
    %c32_22 = arith.constant 32 : index
    %c0_23 = arith.constant 0 : index
    %41 = vector.load %arg8[%c32_22, %c0_23] : memref<72x512xf32, #tpu.memory_space<vmem>>, vector<8x512xf32>
    tpu.vector_store %arg8[%c32_22, %c0_23], %40 {strides = array<i32>} : memref<72x512xf32, #tpu.memory_space<vmem>>, vector<8x512xf32>,
    %c511_i32 = arith.constant 511 : i32
    %42 = tpu.dynamic_rotate %21 by %c511_i32 dim 1 : vector<8x512xf32>, i32 -> vector<8x512xf32>
    %c40 = arith.constant 40 : index
    %c0_24 = arith.constant 0 : index
    %43 = vector.load %arg2[%c40, %c0_24] : memref<72x512xf32, #tpu.memory_space<vmem>>, vector<8x512xf32>
    %44 = arith.mulf %42, %43 : vector<8x512xf32>
    %c40_25 = arith.constant 40 : index
    %c0_26 = arith.constant 0 : index
    %45 = vector.load %arg8[%c40_25, %c0_26] : memref<72x512xf32, #tpu.memory_space<vmem>>, vector<8x512xf32>
    tpu.vector_store %arg8[%c40_25, %c0_26], %44 {strides = array<i32>} : memref<72x512xf32, #tpu.memory_space<vmem>>, vector<8x512xf32>,
    %c497_i32 = arith.constant 497 : i32
    %46 = tpu.dynamic_rotate %21 by %c497_i32 dim 1 : vector<8x512xf32>, i32 -> vector<8x512xf32>
    %c48 = arith.constant 48 : index
    %c0_27 = arith.constant 0 : index
    %47 = vector.load %arg2[%c48, %c0_27] : memref<72x512xf32, #tpu.memory_space<vmem>>, vector<8x512xf32>
    %48 = arith.mulf %46, %47 : vector<8x512xf32>
    %c48_28 = arith.constant 48 : index
    %c0_29 = arith.constant 0 : index
    %49 = vector.load %arg8[%c48_28, %c0_29] : memref<72x512xf32, #tpu.memory_space<vmem>>, vector<8x512xf32>
    tpu.vector_store %arg8[%c48_28, %c0_29], %48 {strides = array<i32>} : memref<72x512xf32, #tpu.memory_space<vmem>>, vector<8x512xf32>,
    %c496_i32 = arith.constant 496 : i32
    %50 = tpu.dynamic_rotate %21 by %c496_i32 dim 1 : vector<8x512xf32>, i32 -> vector<8x512xf32>
    %c56 = arith.constant 56 : index
    %c0_30 = arith.constant 0 : index
    %51 = vector.load %arg2[%c56, %c0_30] : memref<72x512xf32, #tpu.memory_space<vmem>>, vector<8x512xf32>
    %52 = arith.mulf %50, %51 : vector<8x512xf32>
    %c56_31 = arith.constant 56 : index
    %c0_32 = arith.constant 0 : index
    %53 = vector.load %arg8[%c56_31, %c0_32] : memref<72x512xf32, #tpu.memory_space<vmem>>, vector<8x512xf32>
    tpu.vector_store %arg8[%c56_31, %c0_32], %52 {strides = array<i32>} : memref<72x512xf32, #tpu.memory_space<vmem>>, vector<8x512xf32>,
    %c495_i32 = arith.constant 495 : i32
    %54 = tpu.dynamic_rotate %21 by %c495_i32 dim 1 : vector<8x512xf32>, i32 -> vector<8x512xf32>
    %c64 = arith.constant 64 : index
    %c0_33 = arith.constant 0 : index
    %55 = vector.load %arg2[%c64, %c0_33] : memref<72x512xf32, #tpu.memory_space<vmem>>, vector<8x512xf32>
    %56 = arith.mulf %54, %55 : vector<8x512xf32>
    %c64_34 = arith.constant 64 : index
    %c0_35 = arith.constant 0 : index
    %57 = vector.load %arg8[%c64_34, %c0_35] : memref<72x512xf32, #tpu.memory_space<vmem>>, vector<8x512xf32>
    tpu.vector_store %arg8[%c64_34, %c0_35], %56 {strides = array<i32>} : memref<72x512xf32, #tpu.memory_space<vmem>>, vector<8x512xf32>,
    %c0_36 = arith.constant 0 : index
    %c0_37 = arith.constant 0 : index
    %58 = vector.load %arg3[%c0_36, %c0_37] : memref<8x72xf32, #tpu.memory_space<vmem>>, vector<8x72xf32>
    %c0_38 = arith.constant 0 : index
    %c0_39 = arith.constant 0 : index
    %59 = vector.load %arg8[%c0_38, %c0_39] : memref<72x512xf32, #tpu.memory_space<vmem>>, vector<72x512xf32>
    %cst_40 = arith.constant dense<0.000000e+00> : vector<8x512xf32>
    %60 = tpu.matmul %58, %59, %cst_40 {dimension_numbers = #tpu.dot_dimension_numbers<[1], [0], [0], [1], [0, 0, 1, 1], [], []>} : vector<8x72xf32>, vector<72x512xf32>, vector<8x512xf32> -> vector<8x512xf32>
    %c0_41 = arith.constant 0 : index
    %c0_42 = arith.constant 0 : index
    %61 = vector.load %arg5[%c0_41, %c0_42] : memref<8x1xf32, #tpu.memory_space<vmem>>, vector<8x1xf32>
    %62 = vector.broadcast %61 : vector<8x1xf32> to vector<8x512xf32>
    %63 = arith.addf %60, %62 : vector<8x512xf32>
    %c8_43 = arith.constant 8 : index
    %c0_44 = arith.constant 0 : index
    %64 = vector.load %arg7[%c8_43, %c0_44] : memref<24x512xf32, #tpu.memory_space<vmem>>, vector<8x512xf32>
    tpu.vector_store %arg7[%c8_43, %c0_44], %63 {strides = array<i32>} : memref<24x512xf32, #tpu.memory_space<vmem>>, vector<8x512xf32>,
    %cst_45 = arith.constant dense<0.000000e+00> : vector<8xf32>
    %65 = vector.multi_reduction <add>, %63, %cst_45 [1] : vector<8x512xf32> to vector<8xf32>
    %66 = vector.shape_cast %65 : vector<8xf32> to vector<8x1xf32>
    %cst_46 = arith.constant 5.120000e+02 : f32
    %67 = vector.broadcast %cst_46 : f32 to vector<8x1xf32>
    %68 = arith.divf %66, %67 : vector<8x1xf32>
    %69 = arith.mulf %63, %63 : vector<8x512xf32>
    %cst_47 = arith.constant dense<0.000000e+00> : vector<8xf32>
    %70 = vector.multi_reduction <add>, %69, %cst_47 [1] : vector<8x512xf32> to vector<8xf32>
    %71 = vector.shape_cast %70 : vector<8xf32> to vector<8x1xf32>
    %cst_48 = arith.constant 5.120000e+02 : f32
    %72 = vector.broadcast %cst_48 : f32 to vector<8x1xf32>
    %73 = arith.divf %71, %72 : vector<8x1xf32>
    %74 = vector.broadcast %68 : vector<8x1xf32> to vector<8x512xf32>
    %75 = arith.subf %63, %74 : vector<8x512xf32>
    %76 = arith.mulf %68, %68 : vector<8x1xf32>
    %77 = arith.subf %73, %76 : vector<8x1xf32>
    %cst_49 = arith.constant 9.99999974E-6 : f32
    %78 = vector.broadcast %cst_49 : f32 to vector<8x1xf32>
    %79 = arith.addf %77, %78 : vector<8x1xf32>
    %80 = math.rsqrt %79 : vector<8x1xf32>
    %81 = vector.broadcast %80 : vector<8x1xf32> to vector<8x512xf32>
    %82 = arith.mulf %75, %81 : vector<8x512xf32>
    %cst_50 = arith.constant 0.000000e+00 : f32
    %83 = vector.broadcast %cst_50 : f32 to vector<8x512xf32>
    %84 = arith.maximumf %82, %83 : vector<8x512xf32>
    %c0_51 = arith.constant 0 : index
    %c0_52 = arith.constant 0 : index
    %85 = vector.load %arg4[%c0_51, %c0_52] : memref<8x144xf32, #tpu.memory_space<vmem>>, vector<8x72xf32>
    %c0_53 = arith.constant 0 : index
    %c0_54 = arith.constant 0 : index
    %86 = vector.load %arg8[%c0_53, %c0_54] : memref<72x512xf32, #tpu.memory_space<vmem>>, vector<72x512xf32>
    %cst_55 = arith.constant dense<0.000000e+00> : vector<8x512xf32>
    %87 = tpu.matmul %85, %86, %cst_55 {dimension_numbers = #tpu.dot_dimension_numbers<[1], [0], [0], [1], [0, 0, 1, 1], [], []>} : vector<8x72xf32>, vector<72x512xf32>, vector<8x512xf32> -> vector<8x512xf32>
    %c17_i32_56 = arith.constant 17 : i32
    %88 = tpu.dynamic_rotate %84 by %c17_i32_56 dim 1 : vector<8x512xf32>, i32 -> vector<8x512xf32>
    %c0_57 = arith.constant 0 : index
    %c0_58 = arith.constant 0 : index
    %89 = vector.load %arg2[%c0_57, %c0_58] : memref<72x512xf32, #tpu.memory_space<vmem>>, vector<8x512xf32>
    %90 = arith.mulf %88, %89 : vector<8x512xf32>
    %c0_59 = arith.constant 0 : index
    %c72 = arith.constant 72 : index
    %91 = vector.load %arg4[%c0_59, %c72] : memref<8x144xf32, #tpu.memory_space<vmem>>, vector<8x8xf32>
    %cst_60 = arith.constant dense<0.000000e+00> : vector<8x512xf32>
    %92 = tpu.matmul %91, %90, %cst_60 {dimension_numbers = #tpu.dot_dimension_numbers<[1], [0], [0], [1], [0, 0, 1, 1], [], []>} : vector<8x8xf32>, vector<8x512xf32>, vector<8x512xf32> -> vector<8x512xf32>
    %93 = arith.addf %87, %92 : vector<8x512xf32>
    %c16_i32_61 = arith.constant 16 : i32
    %94 = tpu.dynamic_rotate %84 by %c16_i32_61 dim 1 : vector<8x512xf32>, i32 -> vector<8x512xf32>
    %c8_62 = arith.constant 8 : index
    %c0_63 = arith.constant 0 : index
    %95 = vector.load %arg2[%c8_62, %c0_63] : memref<72x512xf32, #tpu.memory_space<vmem>>, vector<8x512xf32>
    %96 = arith.mulf %94, %95 : vector<8x512xf32>
    %c0_64 = arith.constant 0 : index
    %c80 = arith.constant 80 : index
    %97 = vector.load %arg4[%c0_64, %c80] : memref<8x144xf32, #tpu.memory_space<vmem>>, vector<8x8xf32>
    %cst_65 = arith.constant dense<0.000000e+00> : vector<8x512xf32>
    %98 = tpu.matmul %97, %96, %cst_65 {dimension_numbers = #tpu.dot_dimension_numbers<[1], [0], [0], [1], [0, 0, 1, 1], [], []>} : vector<8x8xf32>, vector<8x512xf32>, vector<8x512xf32> -> vector<8x512xf32>
    %99 = arith.addf %93, %98 : vector<8x512xf32>
    %c15_i32_66 = arith.constant 15 : i32
    %100 = tpu.dynamic_rotate %84 by %c15_i32_66 dim 1 : vector<8x512xf32>, i32 -> vector<8x512xf32>
    %c16_67 = arith.constant 16 : index
    %c0_68 = arith.constant 0 : index
    %101 = vector.load %arg2[%c16_67, %c0_68] : memref<72x512xf32, #tpu.memory_space<vmem>>, vector<8x512xf32>
    %102 = arith.mulf %100, %101 : vector<8x512xf32>
    %c0_69 = arith.constant 0 : index
    %c88 = arith.constant 88 : index
    %103 = vector.load %arg4[%c0_69, %c88] : memref<8x144xf32, #tpu.memory_space<vmem>>, vector<8x8xf32>
    %cst_70 = arith.constant dense<0.000000e+00> : vector<8x512xf32>
    %104 = tpu.matmul %103, %102, %cst_70 {dimension_numbers = #tpu.dot_dimension_numbers<[1], [0], [0], [1], [0, 0, 1, 1], [], []>} : vector<8x8xf32>, vector<8x512xf32>, vector<8x512xf32> -> vector<8x512xf32>
    %105 = arith.addf %99, %104 : vector<8x512xf32>
    %c1_i32_71 = arith.constant 1 : i32
    %106 = tpu.dynamic_rotate %84 by %c1_i32_71 dim 1 : vector<8x512xf32>, i32 -> vector<8x512xf32>
    %c24_72 = arith.constant 24 : index
    %c0_73 = arith.constant 0 : index
    %107 = vector.load %arg2[%c24_72, %c0_73] : memref<72x512xf32, #tpu.memory_space<vmem>>, vector<8x512xf32>
    %108 = arith.mulf %106, %107 : vector<8x512xf32>
    %c0_74 = arith.constant 0 : index
    %c96 = arith.constant 96 : index
    %109 = vector.load %arg4[%c0_74, %c96] : memref<8x144xf32, #tpu.memory_space<vmem>>, vector<8x8xf32>
    %cst_75 = arith.constant dense<0.000000e+00> : vector<8x512xf32>
    %110 = tpu.matmul %109, %108, %cst_75 {dimension_numbers = #tpu.dot_dimension_numbers<[1], [0], [0], [1], [0, 0, 1, 1], [], []>} : vector<8x8xf32>, vector<8x512xf32>, vector<8x512xf32> -> vector<8x512xf32>
    %111 = arith.addf %105, %110 : vector<8x512xf32>
    %c0_i32_76 = arith.constant 0 : i32
    %112 = tpu.dynamic_rotate %84 by %c0_i32_76 dim 1 : vector<8x512xf32>, i32 -> vector<8x512xf32>
    %c32_77 = arith.constant 32 : index
    %c0_78 = arith.constant 0 : index
    %113 = vector.load %arg2[%c32_77, %c0_78] : memref<72x512xf32, #tpu.memory_space<vmem>>, vector<8x512xf32>
    %114 = arith.mulf %112, %113 : vector<8x512xf32>
    %c0_79 = arith.constant 0 : index
    %c104 = arith.constant 104 : index
    %115 = vector.load %arg4[%c0_79, %c104] : memref<8x144xf32, #tpu.memory_space<vmem>>, vector<8x8xf32>
    %cst_80 = arith.constant dense<0.000000e+00> : vector<8x512xf32>
    %116 = tpu.matmul %115, %114, %cst_80 {dimension_numbers = #tpu.dot_dimension_numbers<[1], [0], [0], [1], [0, 0, 1, 1], [], []>} : vector<8x8xf32>, vector<8x512xf32>, vector<8x512xf32> -> vector<8x512xf32>
    %117 = arith.addf %111, %116 : vector<8x512xf32>
    %c511_i32_81 = arith.constant 511 : i32
    %118 = tpu.dynamic_rotate %84 by %c511_i32_81 dim 1 : vector<8x512xf32>, i32 -> vector<8x512xf32>
    %c40_82 = arith.constant 40 : index
    %c0_83 = arith.constant 0 : index
    %119 = vector.load %arg2[%c40_82, %c0_83] : memref<72x512xf32, #tpu.memory_space<vmem>>, vector<8x512xf32>
    %120 = arith.mulf %118, %119 : vector<8x512xf32>
    %c0_84 = arith.constant 0 : index
    %c112 = arith.constant 112 : index
    %121 = vector.load %arg4[%c0_84, %c112] : memref<8x144xf32, #tpu.memory_space<vmem>>, vector<8x8xf32>
    %cst_85 = arith.constant dense<0.000000e+00> : vector<8x512xf32>
    %122 = tpu.matmul %121, %120, %cst_85 {dimension_numbers = #tpu.dot_dimension_numbers<[1], [0], [0], [1], [0, 0, 1, 1], [], []>} : vector<8x8xf32>, vector<8x512xf32>, vector<8x512xf32> -> vector<8x512xf32>
    %123 = arith.addf %117, %122 : vector<8x512xf32>
    %c497_i32_86 = arith.constant 497 : i32
    %124 = tpu.dynamic_rotate %84 by %c497_i32_86 dim 1 : vector<8x512xf32>, i32 -> vector<8x512xf32>
    %c48_87 = arith.constant 48 : index
    %c0_88 = arith.constant 0 : index
    %125 = vector.load %arg2[%c48_87, %c0_88] : memref<72x512xf32, #tpu.memory_space<vmem>>, vector<8x512xf32>
    %126 = arith.mulf %124, %125 : vector<8x512xf32>
    %c0_89 = arith.constant 0 : index
    %c120 = arith.constant 120 : index
    %127 = vector.load %arg4[%c0_89, %c120] : memref<8x144xf32, #tpu.memory_space<vmem>>, vector<8x8xf32>
    %cst_90 = arith.constant dense<0.000000e+00> : vector<8x512xf32>
    %128 = tpu.matmul %127, %126, %cst_90 {dimension_numbers = #tpu.dot_dimension_numbers<[1], [0], [0], [1], [0, 0, 1, 1], [], []>} : vector<8x8xf32>, vector<8x512xf32>, vector<8x512xf32> -> vector<8x512xf32>
    %129 = arith.addf %123, %128 : vector<8x512xf32>
    %c496_i32_91 = arith.constant 496 : i32
    %130 = tpu.dynamic_rotate %84 by %c496_i32_91 dim 1 : vector<8x512xf32>, i32 -> vector<8x512xf32>
    %c56_92 = arith.constant 56 : index
    %c0_93 = arith.constant 0 : index
    %131 = vector.load %arg2[%c56_92, %c0_93] : memref<72x512xf32, #tpu.memory_space<vmem>>, vector<8x512xf32>
    %132 = arith.mulf %130, %131 : vector<8x512xf32>
    %c0_94 = arith.constant 0 : index
    %c128 = arith.constant 128 : index
    %133 = vector.load %arg4[%c0_94, %c128] : memref<8x144xf32, #tpu.memory_space<vmem>>, vector<8x8xf32>
    %cst_95 = arith.constant dense<0.000000e+00> : vector<8x512xf32>
    %134 = tpu.matmul %133, %132, %cst_95 {dimension_numbers = #tpu.dot_dimension_numbers<[1], [0], [0], [1], [0, 0, 1, 1], [], []>} : vector<8x8xf32>, vector<8x512xf32>, vector<8x512xf32> -> vector<8x512xf32>
    %135 = arith.addf %129, %134 : vector<8x512xf32>
    %c495_i32_96 = arith.constant 495 : i32
    %136 = tpu.dynamic_rotate %84 by %c495_i32_96 dim 1 : vector<8x512xf32>, i32 -> vector<8x512xf32>
    %c64_97 = arith.constant 64 : index
    %c0_98 = arith.constant 0 : index
    %137 = vector.load %arg2[%c64_97, %c0_98] : memref<72x512xf32, #tpu.memory_space<vmem>>, vector<8x512xf32>
    %138 = arith.mulf %136, %137 : vector<8x512xf32>
    %c0_99 = arith.constant 0 : index
    %c136 = arith.constant 136 : index
    %139 = vector.load %arg4[%c0_99, %c136] : memref<8x144xf32, #tpu.memory_space<vmem>>, vector<8x8xf32>
    %cst_100 = arith.constant dense<0.000000e+00> : vector<8x512xf32>
    %140 = tpu.matmul %139, %138, %cst_100 {dimension_numbers = #tpu.dot_dimension_numbers<[1], [0], [0], [1], [0, 0, 1, 1], [], []>} : vector<8x8xf32>, vector<8x512xf32>, vector<8x512xf32> -> vector<8x512xf32>
    %141 = arith.addf %135, %140 : vector<8x512xf32>
    %c0_101 = arith.constant 0 : index
    %c0_102 = arith.constant 0 : index
    %142 = vector.load %arg6[%c0_101, %c0_102] : memref<8x1xf32, #tpu.memory_space<vmem>>, vector<8x1xf32>
    %143 = vector.broadcast %142 : vector<8x1xf32> to vector<8x512xf32>
    %144 = arith.addf %141, %143 : vector<8x512xf32>
    %c16_103 = arith.constant 16 : index
    %c0_104 = arith.constant 0 : index
    %145 = vector.load %arg7[%c16_103, %c0_104] : memref<24x512xf32, #tpu.memory_space<vmem>>, vector<8x512xf32>
    tpu.vector_store %arg7[%c16_103, %c0_104], %144 {strides = array<i32>} : memref<24x512xf32, #tpu.memory_space<vmem>>, vector<8x512xf32>,
    return
  }
  func.func @transform_0(%arg0: i32) -> (i32, i32) {
    %c0_i32 = arith.constant 0 : i32
    %c0_i32_0 = arith.constant 0 : i32
    %c0_i32_1 = arith.constant 0 : i32
    return %c0_i32, %c0_i32_0 : i32, i32
  }
  func.func @transform_1(%arg0: i32) -> (i32, i32) {
    %c0_i32 = arith.constant 0 : i32
    %c0_i32_0 = arith.constant 0 : i32
    %c0_i32_1 = arith.constant 0 : i32
    return %c0_i32, %c0_i32_0 : i32, i32
  }
  func.func @transform_2(%arg0: i32) -> (i32, i32) {
    %c0_i32 = arith.constant 0 : i32
    %c0_i32_0 = arith.constant 0 : i32
    %c0_i32_1 = arith.constant 0 : i32
    return %c0_i32, %c0_i32_0 : i32, i32
  }
  func.func @transform_3(%arg0: i32) -> (i32, i32) {
    %c0_i32 = arith.constant 0 : i32
    %c0_i32_0 = arith.constant 0 : i32
    %c0_i32_1 = arith.constant 0 : i32
    return %c0_i32, %c0_i32_0 : i32, i32
  }
  func.func @transform_4(%arg0: i32) -> (i32, i32) {
    %c0_i32 = arith.constant 0 : i32
    %c0_i32_0 = arith.constant 0 : i32
    %c0_i32_1 = arith.constant 0 : i32
    return %c0_i32, %c0_i32_0 : i32, i32
  }
  func.func @transform_5(%arg0: i32) -> (i32, i32) {
    %c0_i32 = arith.constant 0 : i32
    %c0_i32_0 = arith.constant 0 : i32
    %c0_i32_1 = arith.constant 0 : i32
    return %c0_i32, %c0_i32_0 : i32, i32
  }
  func.func @transform_6(%arg0: i32) -> (i32, i32) {
    %c0_i32 = arith.constant 0 : i32
    %c0_i32_0 = arith.constant 0 : i32
    %c0_i32_1 = arith.constant 0 : i32
    return %c0_i32, %c0_i32_0 : i32, i32
  }
}

</mosaic_0001>

<llo_original>
// kernel: tpu_custom_call.1
$region0: #{tpu_custom_call.1}
  #allocation0 [shape = 'u32[]', space=smem, size = 0x4, offset = 0x4, fixed_abs, tag = 'smem constant byte address 0x4 - core index']
  #allocation1 [shape = 'u32[144,128]{1,0:T(1,128)}', space=vmem, size = 0x12000, scoped, tag = 'internal scratch']
  #allocation2 [shape = 'f32[72,512]{1,0:T(8,128)}', space=vmem, size = 0x24000, scoped, tag = 'scratch operand']
  %s0 = inlined_call_operand.hbm [shape: f32[8,512], index: 0, kind: input, shape index: {}]
  %s1 = inlined_call_operand.hbm [shape: f32[72,512], index: 1, kind: input, shape index: {}]
  %s2 = inlined_call_operand.vmem [shape: f32[8,72], index: 2, kind: input, shape index: {}]
  %s3 = inlined_call_operand.vmem [shape: f32[8,144], index: 3, kind: input, shape index: {}]
  %s4 = inlined_call_operand.vmem [shape: f32[8,1], index: 4, kind: input, shape index: {}]
  %s5 = inlined_call_operand.vmem [shape: f32[8,1], index: 5, kind: input, shape index: {}]
  %s6 = inlined_call_operand.hbm [shape: f32[24,512], index: 6, kind: output, shape index: {}]
  %s7 = sld [smem:[#allocation0]]
  $region42: #{tpu_custom_call.1} parent=0
    _
  %s9 = ssub.s32 1, %s7
  %s10 = scalar_select 0, %s9, %s7
  $region1: #{tpu_custom_call.1} parent=0
    #allocation3 [shape = 'u8[16384]{0}', space=vmem, size = 0x4000, scoped, tag = 'input window, operand 0, single buffered']
    #allocation4 [shape = 's32[1]{0}', space=sflag, size = 0x4, scoped, tag = 'scoped memory for tpu_custom_call.1']
    #allocation5 [shape = 's32[1]{0}', space=sflag, size = 0x4, scoped, tag = 'scoped memory for tpu_custom_call.1']
    #allocation6 [shape = 'u8[147456]{0}', space=vmem, size = 0x24000, scoped, tag = 'input window, operand 1, single buffered']
    #allocation7 [shape = 's32[1]{0}', space=sflag, size = 0x4, scoped, tag = 'scoped memory for tpu_custom_call.1']
    #allocation8 [shape = 'u8[49152]{0}', space=vmem, size = 0xc000, scoped, tag = 'output window, operand 0, single buffered']
    %11 = vsyncpa [#allocation4], 0
    %12 = vsyncpa [#allocation7], 0
    %13 = vsyncpa [#allocation5], 0
    // Predicated region
    $region2: #{tpu_custom_call.1} parent=1 // pred_check
      _
    $region3: #{tpu_custom_call.1} parent=1 // pred_check_branch
      %15 = sbr.rel (0) target = $region5
    $region4: #{tpu_custom_call.1} parent=1 // pred_region
      %s17 = ssub.s32 512, 512
      %18 = vsyncadd [#allocation4], %s17
      %s20 = sshll.u32 [#allocation3], 4
      %s21 = int_to_ptr.vmem [resolvable:$true] %s20
      %23 = dma.hbm_to_vmem [thread:$0]  %s0, 512, %s21, [#allocation4]
    $region5: #{tpu_custom_call.1} parent=1 // pred_fallthru
      _
    // Predicated region
    $region6: #{tpu_custom_call.1} parent=1 // pred_check
      _
    $region7: #{tpu_custom_call.1} parent=1 // pred_check_branch
      %25 = sbr.rel (0) target = $region9
    $region8: #{tpu_custom_call.1} parent=1 // pred_region
      %s27 = ssub.s32 4608, 4608
      %28 = vsyncadd [#allocation7], %s27
      %s29 = sshll.u32 [#allocation6], 4
      %s30 = int_to_ptr.vmem [resolvable:$true] %s29
      %35 = dma.hbm_to_vmem [thread:$0]  %s1, 4608, %s30, [#allocation7], 512, 512, 32
    $region9: #{tpu_custom_call.1} parent=1 // pred_fallthru
      _
    // Predicated region
    $region10: #{tpu_custom_call.1} parent=1 // pred_check
      _
    $region11: #{tpu_custom_call.1} parent=1 // pred_check_branch
      %37 = sbr.rel (0) target = $region13
    $region12: #{tpu_custom_call.1} parent=1 // pred_region
      _
    $region13: #{tpu_custom_call.1} parent=1 // pred_fallthru
      _
    // Predicated region
    $region14: #{tpu_custom_call.1} parent=1 // pred_check
      _
    $region15: #{tpu_custom_call.1} parent=1 // pred_check_branch
      %39 = sbr.rel (0) target = $region17
    $region16: #{tpu_custom_call.1} parent=1 // pred_region
      _
    $region17: #{tpu_custom_call.1} parent=1 // pred_fallthru
      _
    // Predicated region
    $region18: #{tpu_custom_call.1} parent=1 // pred_check
      _
    $region19: #{tpu_custom_call.1} parent=1 // pred_check_branch
      %41 = sbr.rel (0) target = $region21
    $region20: #{tpu_custom_call.1} parent=1 // pred_region
      _
    $region21: #{tpu_custom_call.1} parent=1 // pred_fallthru
      _
    // Predicated region
    $region22: #{tpu_custom_call.1} parent=1 // pred_check
      _
    $region23: #{tpu_custom_call.1} parent=1 // pred_check_branch
      %43 = sbr.rel (0) target = $region25
    $region24: #{tpu_custom_call.1} parent=1 // pred_region
      _
    $region25: #{tpu_custom_call.1} parent=1 // pred_fallthru
      _
    // Predicated region
    $region26: #{tpu_custom_call.1} parent=1 // pred_check
      _
    $region27: #{tpu_custom_call.1} parent=1 // pred_check_branch
      %45 = sbr.rel (0) target = $region29
    $region28: #{tpu_custom_call.1} parent=1 // pred_region
      %46 = dma.done [#allocation4], 512
    $region29: #{tpu_custom_call.1} parent=1 // pred_fallthru
      _
    // Predicated region
    $region30: #{tpu_custom_call.1} parent=1 // pred_check
      _
    $region31: #{tpu_custom_call.1} parent=1 // pred_check_branch
      %48 = sbr.rel (0) target = $region33
    $region32: #{tpu_custom_call.1} parent=1 // pred_region
      %49 = dma.done [#allocation7], 4608
    $region33: #{tpu_custom_call.1} parent=1 // pred_fallthru
      _
    %v50 = vld [vmem:[#allocation3] sm:$0xff]
    %v51 = vld [vmem:[#allocation3 + $0x8] sm:$0xff]
    %v52 = vld [vmem:[#allocation3 + $0x10] sm:$0xff]
    %v53 = vld [vmem:[#allocation3 + $0x18] sm:$0xff]
    %54 = vst [vmem:[#allocation8] sm:$0xff] %v50
    %55 = vst [vmem:[#allocation8 + $0x8] sm:$0xff] %v51
    %56 = vst [vmem:[#allocation8 + $0x10] sm:$0xff] %v52
    %57 = vst [vmem:[#allocation8 + $0x18] sm:$0xff] %v53
    %v58 = vadd.f32 %v50, %v51
    %v59 = vadd.f32 %v58, %v52
    %v60 = vadd.f32 %v59, %v53
    %61 = vadd.xlane.f32.xlu0 %v60
    %v62 = vpop.xlane.xlu0 %61
    %v63 = vrcp.pop 512.0
    %v64 = vmul.f32 %v62, %v63
    %v65 = vmul.f32 %v50, %v50
    %v66 = vmul.f32 %v51, %v51
    %v67 = vmul.f32 %v52, %v52
    %v68 = vmul.f32 %v53, %v53
    %v69 = vadd.f32 %v65, %v66
    %v70 = vadd.f32 %v69, %v67
    %v71 = vadd.f32 %v70, %v68
    %72 = vadd.xlane.f32.xlu0 %v71
    %v73 = vpop.xlane.xlu0 %72
    %v74 = vmul.f32 %v73, %v63
    %v75 = vsub.f32 %v50, %v64
    %v76 = vsub.f32 %v51, %v64
    %v77 = vsub.f32 %v52, %v64
    %v78 = vsub.f32 %v53, %v64
    %v79 = vmul.f32 %v64, %v64
    %v80 = vsub.f32 %v74, %v79
    %v81 = vadd.f32 %v80, 1e-05
    %v82 = vrsqrt.pop %v81
    %v83 = vmul.f32 %v75, %v82
    %v84 = vmul.f32 %v76, %v82
    %v85 = vmul.f32 %v77, %v82
    %v86 = vmul.f32 %v78, %v82
    %v87 = vmax.f32 %v83, 0.0
    %v88 = vmax.f32 %v84, 0.0
    %v89 = vmax.f32 %v85, 0.0
    %v90 = vmax.f32 %v86, 0.0
    %91 = vrot.lane.b32.xlu0 %v87, 17
    %v92 = vpop.permute.xlu0 %91
    %93 = vrot.lane.b32.xlu0 %v88, 17
    %v94 = vpop.permute.xlu0 %93
    %95 = vrot.lane.b32.xlu0 %v89, 17
    %v96 = vpop.permute.xlu0 %95
    %97 = vrot.lane.b32.xlu0 %v90, 17
    %v98 = vpop.permute.xlu0 %97
    %v99 = vlaneseq
    %v100 = vand.u32 %v99, 127
    %vm101 = vcmp.lt.s32.totalorder %v100, 17
    %v102 = vsel %vm101, %v96, %v98
    %v103 = vsel %vm101, %v94, %v96
    %v104 = vsel %vm101, %v92, %v94
    %v105 = vsel %vm101, %v98, %v92
    %v106 = vld [vmem:[#allocation6] sm:$0xff]
    %v107 = vld [vmem:[#allocation6 + $0x8] sm:$0xff]
    %v108 = vld [vmem:[#allocation6 + $0x10] sm:$0xff]
    %v109 = vld [vmem:[#allocation6 + $0x18] sm:$0xff]
    %v110 = vmul.f32 %v105, %v106
    %v111 = vmul.f32 %v104, %v107
    %v112 = vmul.f32 %v103, %v108
    %v113 = vmul.f32 %v102, %v109
    %114 = vst [vmem:[#allocation2] sm:$0xff] %v110
    %115 = vst [vmem:[#allocation2 + $0x8] sm:$0xff] %v111
    %116 = vst [vmem:[#allocation2 + $0x10] sm:$0xff] %v112
    %117 = vst [vmem:[#allocation2 + $0x18] sm:$0xff] %v113
    %118 = vrot.lane.b32.xlu0 %v87, 16
    %v119 = vpop.permute.xlu0 %118
    %120 = vrot.lane.b32.xlu0 %v88, 16
    %v121 = vpop.permute.xlu0 %120
    %122 = vrot.lane.b32.xlu0 %v89, 16
    %v123 = vpop.permute.xlu0 %122
    %124 = vrot.lane.b32.xlu0 %v90, 16
    %v125 = vpop.permute.xlu0 %124
    %vm126 = vcmp.lt.s32.totalorder %v100, 16
    %v127 = vsel %vm126, %v123, %v125
    %v128 = vsel %vm126, %v121, %v123
    %v129 = vsel %vm126, %v119, %v121
    %v130 = vsel %vm126, %v125, %v119
    %v131 = vld [vmem:[#allocation6 + $0x20] sm:$0xff]
    %v132 = vld [vmem:[#allocation6 + $0x28] sm:$0xff]
    %v133 = vld [vmem:[#allocation6 + $0x30] sm:$0xff]
    %v134 = vld [vmem:[#allocation6 + $0x38] sm:$0xff]
    %v135 = vmul.f32 %v130, %v131
    %v136 = vmul.f32 %v129, %v132
    %v137 = vmul.f32 %v128, %v133
    %v138 = vmul.f32 %v127, %v134
    %139 = vst [vmem:[#allocation2 + $0x20] sm:$0xff] %v135
    %140 = vst [vmem:[#allocation2 + $0x28] sm:$0xff] %v136
    %141 = vst [vmem:[#allocation2 + $0x30] sm:$0xff] %v137
    %142 = vst [vmem:[#allocation2 + $0x38] sm:$0xff] %v138
    %143 = vrot.lane.b32.xlu0 %v87, 15
    %v144 = vpop.permute.xlu0 %143
    %145 = vrot.lane.b32.xlu0 %v88, 15
    %v146 = vpop.permute.xlu0 %145
    %147 = vrot.lane.b32.xlu0 %v89, 15
    %v148 = vpop.permute.xlu0 %147
    %149 = vrot.lane.b32.xlu0 %v90, 15
    %v150 = vpop.permute.xlu0 %149
    %vm151 = vcmp.lt.s32.totalorder %v100, 15
    %v152 = vsel %vm151, %v148, %v150
    %v153 = vsel %vm151, %v146, %v148
    %v154 = vsel %vm151, %v144, %v146
    %v155 = vsel %vm151, %v150, %v144
    %v156 = vld [vmem:[#allocation6 + $0x40] sm:$0xff]
    %v157 = vld [vmem:[#allocation6 + $0x48] sm:$0xff]
    %v158 = vld [vmem:[#allocation6 + $0x50] sm:$0xff]
    %v159 = vld [vmem:[#allocation6 + $0x58] sm:$0xff]
    %v160 = vmul.f32 %v155, %v156
    %v161 = vmul.f32 %v154, %v157
    %v162 = vmul.f32 %v153, %v158
    %v163 = vmul.f32 %v152, %v159
    %164 = vst [vmem:[#allocation2 + $0x40] sm:$0xff] %v160
    %165 = vst [vmem:[#allocation2 + $0x48] sm:$0xff] %v161
    %166 = vst [vmem:[#allocation2 + $0x50] sm:$0xff] %v162
    %167 = vst [vmem:[#allocation2 + $0x58] sm:$0xff] %v163
    %168 = vrot.lane.b32.xlu0 %v87, 1
    %v169 = vpop.permute.xlu0 %168
    %170 = vrot.lane.b32.xlu0 %v88, 1
    %v171 = vpop.permute.xlu0 %170
    %172 = vrot.lane.b32.xlu0 %v89, 1
    %v173 = vpop.permute.xlu0 %172
    %174 = vrot.lane.b32.xlu0 %v90, 1
    %v175 = vpop.permute.xlu0 %174
    %vm176 = vcmp.lt.s32.totalorder %v100, 1
    %v177 = vsel %vm176, %v173, %v175
    %v178 = vsel %vm176, %v171, %v173
    %v179 = vsel %vm176, %v169, %v171
    %v180 = vsel %vm176, %v175, %v169
    %v181 = vld [vmem:[#allocation6 + $0x60] sm:$0xff]
    %v182 = vld [vmem:[#allocation6 + $0x68] sm:$0xff]
    %v183 = vld [vmem:[#allocation6 + $0x70] sm:$0xff]
    %v184 = vld [vmem:[#allocation6 + $0x78] sm:$0xff]
    %v185 = vmul.f32 %v180, %v181
    %v186 = vmul.f32 %v179, %v182
    %v187 = vmul.f32 %v178, %v183
    %v188 = vmul.f32 %v177, %v184
    %189 = vst [vmem:[#allocation2 + $0x60] sm:$0xff] %v185
    %190 = vst [vmem:[#allocation2 + $0x68] sm:$0xff] %v186
    %191 = vst [vmem:[#allocation2 + $0x70] sm:$0xff] %v187
    %192 = vst [vmem:[#allocation2 + $0x78] sm:$0xff] %v188
    %v193 = vld [vmem:[#allocation6 + $0x80] sm:$0xff]
    %v194 = vld [vmem:[#allocation6 + $0x88] sm:$0xff]
    %v195 = vld [vmem:[#allocation6 + $0x90] sm:$0xff]
    %v196 = vld [vmem:[#allocation6 + $0x98] sm:$0xff]
    %v197 = vmul.f32 %v87, %v193
    %v198 = vmul.f32 %v88, %v194
    %v199 = vmul.f32 %v89, %v195
    %v200 = vmul.f32 %v90, %v196
    %201 = vst [vmem:[#allocation2 + $0x80] sm:$0xff] %v197
    %202 = vst [vmem:[#allocation2 + $0x88] sm:$0xff] %v198
    %203 = vst [vmem:[#allocation2 + $0x90] sm:$0xff] %v199
    %204 = vst [vmem:[#allocation2 + $0x98] sm:$0xff] %v200
    %205 = vrot.lane.b32.xlu0 %v87, 127
    %v206 = vpop.permute.xlu0 %205
    %207 = vrot.lane.b32.xlu0 %v88, 127
    %v208 = vpop.permute.xlu0 %207
    %209 = vrot.lane.b32.xlu0 %v89, 127
    %v210 = vpop.permute.xlu0 %209
    %211 = vrot.lane.b32.xlu0 %v90, 127
    %v212 = vpop.permute.xlu0 %211
    %vm213 = vcmp.lt.s32.totalorder %v100, 127
    %v214 = vsel %vm213, %v210, %v212
    %v215 = vsel %vm213, %v208, %v210
    %v216 = vsel %vm213, %v206, %v208
    %v217 = vsel %vm213, %v212, %v206
    %v218 = vld [vmem:[#allocation6 + $0xa0] sm:$0xff]
    %v219 = vld [vmem:[#allocation6 + $0xa8] sm:$0xff]
    %v220 = vld [vmem:[#allocation6 + $0xb0] sm:$0xff]
    %v221 = vld [vmem:[#allocation6 + $0xb8] sm:$0xff]
    %v222 = vmul.f32 %v216, %v218
    %v223 = vmul.f32 %v215, %v219
    %v224 = vmul.f32 %v214, %v220
    %v225 = vmul.f32 %v217, %v221
    %226 = vst [vmem:[#allocation2 + $0xa0] sm:$0xff] %v222
    %227 = vst [vmem:[#allocation2 + $0xa8] sm:$0xff] %v223
    %228 = vst [vmem:[#allocation2 + $0xb0] sm:$0xff] %v224
    %229 = vst [vmem:[#allocation2 + $0xb8] sm:$0xff] %v225
    %230 = vrot.lane.b32.xlu0 %v87, 113
    %v231 = vpop.permute.xlu0 %230
    %232 = vrot.lane.b32.xlu0 %v88, 113
    %v233 = vpop.permute.xlu0 %232
    %234 = vrot.lane.b32.xlu0 %v89, 113
    %v235 = vpop.permute.xlu0 %234
    %236 = vrot.lane.b32.xlu0 %v90, 113
    %v237 = vpop.permute.xlu0 %236
    %vm238 = vcmp.lt.s32.totalorder %v100, 113
    %v239 = vsel %vm238, %v235, %v237
    %v240 = vsel %vm238, %v233, %v235
    %v241 = vsel %vm238, %v231, %v233
    %v242 = vsel %vm238, %v237, %v231
    %v243 = vld [vmem:[#allocation6 + $0xc0] sm:$0xff]
    %v244 = vld [vmem:[#allocation6 + $0xc8] sm:$0xff]
    %v245 = vld [vmem:[#allocation6 + $0xd0] sm:$0xff]
    %v246 = vld [vmem:[#allocation6 + $0xd8] sm:$0xff]
    %v247 = vmul.f32 %v241, %v243
    %v248 = vmul.f32 %v240, %v244
    %v249 = vmul.f32 %v239, %v245
    %v250 = vmul.f32 %v242, %v246
    %251 = vst [vmem:[#allocation2 + $0xc0] sm:$0xff] %v247
    %252 = vst [vmem:[#allocation2 + $0xc8] sm:$0xff] %v248
    %253 = vst [vmem:[#allocation2 + $0xd0] sm:$0xff] %v249
    %254 = vst [vmem:[#allocation2 + $0xd8] sm:$0xff] %v250
    %255 = vrot.lane.b32.xlu0 %v87, 112
    %v256 = vpop.permute.xlu0 %255
    %257 = vrot.lane.b32.xlu0 %v88, 112
    %v258 = vpop.permute.xlu0 %257
    %259 = vrot.lane.b32.xlu0 %v89, 112
    %v260 = vpop.permute.xlu0 %259
    %261 = vrot.lane.b32.xlu0 %v90, 112
    %v262 = vpop.permute.xlu0 %261
    %vm263 = vcmp.lt.s32.totalorder %v100, 112
    %v264 = vsel %vm263, %v260, %v262
    %v265 = vsel %vm263, %v258, %v260
    %v266 = vsel %vm263, %v256, %v258
    %v267 = vsel %vm263, %v262, %v256
    %v268 = vld [vmem:[#allocation6 + $0xe0] sm:$0xff]
    %v269 = vld [vmem:[#allocation6 + $0xe8] sm:$0xff]
    %v270 = vld [vmem:[#allocation6 + $0xf0] sm:$0xff]
    %v271 = vld [vmem:[#allocation6 + $0xf8] sm:$0xff]
    %v272 = vmul.f32 %v266, %v268
    %v273 = vmul.f32 %v265, %v269
    %v274 = vmul.f32 %v264, %v270
    %v275 = vmul.f32 %v267, %v271
    %276 = vst [vmem:[#allocation2 + $0xe0] sm:$0xff] %v272
    %277 = vst [vmem:[#allocation2 + $0xe8] sm:$0xff] %v273
    %278 = vst [vmem:[#allocation2 + $0xf0] sm:$0xff] %v274
    %279 = vst [vmem:[#allocation2 + $0xf8] sm:$0xff] %v275
    %280 = vrot.lane.b32.xlu0 %v87, 111
    %v281 = vpop.permute.xlu0 %280
    %282 = vrot.lane.b32.xlu0 %v88, 111
    %v283 = vpop.permute.xlu0 %282
    %284 = vrot.lane.b32.xlu0 %v89, 111
    %v285 = vpop.permute.xlu0 %284
    %286 = vrot.lane.b32.xlu0 %v90, 111
    %v287 = vpop.permute.xlu0 %286
    %vm288 = vcmp.lt.s32.totalorder %v100, 111
    %v289 = vsel %vm288, %v285, %v287
    %v290 = vsel %vm288, %v283, %v285
    %v291 = vsel %vm288, %v281, %v283
    %v292 = vsel %vm288, %v287, %v281
    %v293 = vld [vmem:[#allocation6 + $0x100] sm:$0xff]
    %v294 = vld [vmem:[#allocation6 + $0x108] sm:$0xff]
    %v295 = vld [vmem:[#allocation6 + $0x110] sm:$0xff]
    %v296 = vld [vmem:[#allocation6 + $0x118] sm:$0xff]
    %v297 = vmul.f32 %v291, %v293
    %v298 = vmul.f32 %v290, %v294
    %v299 = vmul.f32 %v289, %v295
    %v300 = vmul.f32 %v292, %v296
    %301 = vst [vmem:[#allocation2 + $0x100] sm:$0xff] %v297
    %302 = vst [vmem:[#allocation2 + $0x108] sm:$0xff] %v298
    %303 = vst [vmem:[#allocation2 + $0x110] sm:$0xff] %v299
    %304 = vst [vmem:[#allocation2 + $0x118] sm:$0xff] %v300
    %v305 = vld [vmem:[%s2] sm:$0xff]
    %v306 = vld [vmem:[#allocation2] sm:$0xff]
    %v307 = vld [vmem:[#allocation2 + $0x8] sm:$0xff]
    %v308 = vld [vmem:[#allocation2 + $0x10] sm:$0xff]
    %v309 = vld [vmem:[#allocation2 + $0x18] sm:$0xff]
    %v310 = vld [vmem:[#allocation2 + $0x20] sm:$0xff]
    %v311 = vld [vmem:[#allocation2 + $0x28] sm:$0xff]
    %v312 = vld [vmem:[#allocation2 + $0x30] sm:$0xff]
    %v313 = vld [vmem:[#allocation2 + $0x38] sm:$0xff]
    %v314 = vld [vmem:[#allocation2 + $0x40] sm:$0xff]
    %v315 = vld [vmem:[#allocation2 + $0x48] sm:$0xff]
    %v316 = vld [vmem:[#allocation2 + $0x50] sm:$0xff]
    %v317 = vld [vmem:[#allocation2 + $0x58] sm:$0xff]
    %v318 = vld [vmem:[#allocation2 + $0x60] sm:$0xff]
    %v319 = vld [vmem:[#allocation2 + $0x68] sm:$0xff]
    %v320 = vld [vmem:[#allocation2 + $0x70] sm:$0xff]
    %v321 = vld [vmem:[#allocation2 + $0x78] sm:$0xff]
    %v322 = vld [vmem:[#allocation2 + $0x80] sm:$0xff]
    %v323 = vld [vmem:[#allocation2 + $0x88] sm:$0xff]
    %v324 = vld [vmem:[#allocation2 + $0x90] sm:$0xff]
    %v325 = vld [vmem:[#allocation2 + $0x98] sm:$0xff]
    %v326 = vld [vmem:[#allocation2 + $0xa0] sm:$0xff]
    %v327 = vld [vmem:[#allocation2 + $0xa8] sm:$0xff]
    %v328 = vld [vmem:[#allocation2 + $0xb0] sm:$0xff]
    %v329 = vld [vmem:[#allocation2 + $0xb8] sm:$0xff]
    %v330 = vld [vmem:[#allocation2 + $0xc0] sm:$0xff]
    %v331 = vld [vmem:[#allocation2 + $0xc8] sm:$0xff]
    %v332 = vld [vmem:[#allocation2 + $0xd0] sm:$0xff]
    %v333 = vld [vmem:[#allocation2 + $0xd8] sm:$0xff]
    %v334 = vld [vmem:[#allocation2 + $0xe0] sm:$0xff]
    %v335 = vld [vmem:[#allocation2 + $0xe8] sm:$0xff]
    %v336 = vld [vmem:[#allocation2 + $0xf0] sm:$0xff]
    %v337 = vld [vmem:[#allocation2 + $0xf8] sm:$0xff]
    %v338 = vld [vmem:[#allocation2 + $0x100] sm:$0xff]
    %v339 = vld [vmem:[#allocation2 + $0x108] sm:$0xff]
    %v340 = vld [vmem:[#allocation2 + $0x110] sm:$0xff]
    %v341 = vld [vmem:[#allocation2 + $0x118] sm:$0xff]
    %v342 = vld [vmem:[%s4] sm:$0xff]
    %344 = vset.pattern.permute.xlu0 0
    %345 = vperm.xlu0 %344, %v342
    %v346 = vpop.permute.xlu0 %345
    %vm348 = vcmask 588800
    %v350 = vsel %vm348, %v305, 0
    %352 = vmatprep.subr.mxu0 %v307
    %353 = vmatpush1.msra.mxu0 %v306
    %354 = vmatprep.subr.mxu0 %v311
    %355 = vmatpush1.msra.mxu0 %v310
    %356 = vmatprep.subr.mxu0 %v315
    %357 = vmatpush1.msra.mxu0 %v314
    %358 = vmatprep.subr.mxu0 %v319
    %359 = vmatpush1.msra.mxu0 %v318
    %360 = vmatprep.subr.mxu0 %v323
    %361 = vmatpush1.msra.mxu0 %v322
    %362 = vmatprep.subr.mxu0 %v327
    %363 = vmatpush1.msra.mxu0 %v326
    %364 = vmatprep.subr.mxu0 %v331
    %365 = vmatpush1.msra.mxu0 %v330
    %366 = vmatprep.subr.mxu0 %v335
    %367 = vmatpush1.msra.mxu0 %v334
    %368 = vmatprep.subr.mxu0 %v339
    %369 = vmatpush1.msra.mxu0 %v338
    %370 = vmatprep.subr.mxu0 0.0
    %371 = vmatpush1.msra.mxu0 0.0
    %372 = vmatprep.subr.mxu0 0.0
    %373 = vmatpush1.msra.mxu0 0.0
    %374 = vmatprep.subr.mxu0 0.0
    %375 = vmatpush1.msra.mxu0 0.0
    %376 = vmatprep.subr.mxu0 0.0
    %377 = vmatpush1.msra.mxu0 0.0
    %378 = vmatprep.subr.mxu0 0.0
    %379 = vmatpush1.msra.mxu0 0.0
    %380 = vmatprep.subr.mxu0 0.0
    %381 = vmatpush1.msra.mxu0 0.0
    %382 = vmatprep.subr.mxu0 0.0
    %383 = vmatpush1.msra.mxu0 0.0
    %384 = vmatprep.subr.mxu0 0.0
    %385 = vmatpush1.msra.mxu0 0.0
    %386 = vmatprep.subr.mxu0 0.0
    %387 = vmatpush1.msra.mxu0 0.0
    %388 = vmatprep.subr.mxu0 0.0
    %389 = vmatpush1.msra.mxu0 0.0
    %390 = vmatprep.subr.mxu0 0.0
    %391 = vmatpush1.msra.mxu0 0.0
    %392 = vmatprep.subr.mxu0 0.0
    %393 = vmatpush1.msra.mxu0 0.0
    %394 = vmatprep.subr.mxu0 0.0
    %395 = vmatpush1.msra.mxu0 0.0
    %396 = vmatprep.subr.mxu0 0.0
    %397 = vmatpush1.msra.mxu0 0.0
    %398 = vmatprep.subr.mxu0 0.0
    %399 = vmatpush1.msra.mxu0 0.0
    %400 = vmatprep.subr.mxu0 0.0
    %401 = vmatpush1.msra.mxu0 0.0
    %402 = vmatprep.subr.mxu0 0.0
    %403 = vmatpush1.msra.mxu0 0.0
    %404 = vmatprep.subr.mxu0 0.0
    %405 = vmatpush1.msra.mxu0 0.0
    %406 = vmatprep.subr.mxu0 0.0
    %407 = vmatpush1.msra.mxu0 0.0
    %408 = vmatprep.subr.mxu0 0.0
    %409 = vmatpush1.msra.mxu0 0.0
    %410 = vmatprep.subr.mxu0 0.0
    %411 = vmatpush1.msra.mxu0 0.0
    %412 = vmatprep.subr.mxu0 0.0
    %413 = vmatpush1.msra.mxu0 0.0
    %414 = vmatprep.subr.mxu0 0.0
    %415 = vmatpush1.msra.mxu0 0.0
    %416 = vmatprep.mubr.f32.mxu0 0.0
    %417 = vmatmul.mubr.f32.gmra.mrb[0].mxu0 %v350
    %v418 = vpop.f32.mrb[0].mxu0
    %v419 = vadd.f32 %v346, %v418
    %v420 = vpop.f32.mrb[0].mxu0
    %v421 = vadd.f32 %v346, %v420
    %422 = vdwg.mxu0
    %423 = vmatprep.subr.mxu0 %v309
    %424 = vmatpush1.msra.mxu0 %v308
    %425 = vmatprep.subr.mxu0 %v313
    %426 = vmatpush1.msra.mxu0 %v312
    %427 = vmatprep.subr.mxu0 %v317
    %428 = vmatpush1.msra.mxu0 %v316
    %429 = vmatprep.subr.mxu0 %v321
    %430 = vmatpush1.msra.mxu0 %v320
    %431 = vmatprep.subr.mxu0 %v325
    %432 = vmatpush1.msra.mxu0 %v324
    %433 = vmatprep.subr.mxu0 %v329
    %434 = vmatpush1.msra.mxu0 %v328
    %435 = vmatprep.subr.mxu0 %v333
    %436 = vmatpush1.msra.mxu0 %v332
    %437 = vmatprep.subr.mxu0 %v337
    %438 = vmatpush1.msra.mxu0 %v336
    %439 = vmatprep.subr.mxu0 %v341
    %440 = vmatpush1.msra.mxu0 %v340
    %441 = vmatprep.subr.mxu0 0.0
    %442 = vmatpush1.msra.mxu0 0.0
    %443 = vmatprep.subr.mxu0 0.0
    %444 = vmatpush1.msra.mxu0 0.0
    %445 = vmatprep.subr.mxu0 0.0
    %446 = vmatpush1.msra.mxu0 0.0
    %447 = vmatprep.subr.mxu0 0.0
    %448 = vmatpush1.msra.mxu0 0.0
    %449 = vmatprep.subr.mxu0 0.0
    %450 = vmatpush1.msra.mxu0 0.0
    %451 = vmatprep.subr.mxu0 0.0
    %452 = vmatpush1.msra.mxu0 0.0
    %453 = vmatprep.subr.mxu0 0.0
    %454 = vmatpush1.msra.mxu0 0.0
    %455 = vmatprep.subr.mxu0 0.0
    %456 = vmatpush1.msra.mxu0 0.0
    %457 = vmatprep.subr.mxu0 0.0
    %458 = vmatpush1.msra.mxu0 0.0
    %459 = vmatprep.subr.mxu0 0.0
    %460 = vmatpush1.msra.mxu0 0.0
    %461 = vmatprep.subr.mxu0 0.0
    %462 = vmatpush1.msra.mxu0 0.0
    %463 = vmatprep.subr.mxu0 0.0
    %464 = vmatpush1.msra.mxu0 0.0
    %465 = vmatprep.subr.mxu0 0.0
    %466 = vmatpush1.msra.mxu0 0.0
    %467 = vmatprep.subr.mxu0 0.0
    %468 = vmatpush1.msra.mxu0 0.0
    %469 = vmatprep.subr.mxu0 0.0
    %470 = vmatpush1.msra.mxu0 0.0
    %471 = vmatprep.subr.mxu0 0.0
    %472 = vmatpush1.msra.mxu0 0.0
    %473 = vmatprep.subr.mxu0 0.0
    %474 = vmatpush1.msra.mxu0 0.0
    %475 = vmatprep.subr.mxu0 0.0
    %476 = vmatpush1.msra.mxu0 0.0
    %477 = vmatprep.subr.mxu0 0.0
    %478 = vmatpush1.msra.mxu0 0.0
    %479 = vmatprep.subr.mxu0 0.0
    %480 = vmatpush1.msra.mxu0 0.0
    %481 = vmatprep.subr.mxu0 0.0
    %482 = vmatpush1.msra.mxu0 0.0
    %483 = vmatprep.subr.mxu0 0.0
    %484 = vmatpush1.msra.mxu0 0.0
    %485 = vmatprep.subr.mxu0 0.0
    %486 = vmatpush1.msra.mxu0 0.0
    %487 = vmatprep.mubr.f32.mxu0 0.0
    %488 = vmatmul.mubr.f32.gmra.mrb[0].mxu0 %v350
    %v489 = vpop.f32.mrb[0].mxu0
    %v490 = vadd.f32 %v346, %v489
    %v491 = vpop.f32.mrb[0].mxu0
    %v492 = vadd.f32 %v346, %v491
    %493 = vdwg.mxu0
    %494 = vst [vmem:[#allocation8 + $0x20] sm:$0xff] %v419
    %495 = vst [vmem:[#allocation8 + $0x28] sm:$0xff] %v421
    %496 = vst [vmem:[#allocation8 + $0x30] sm:$0xff] %v490
    %497 = vst [vmem:[#allocation8 + $0x38] sm:$0xff] %v492
    %v498 = vadd.f32 %v419, %v421
    %v499 = vadd.f32 %v498, %v490
    %v500 = vadd.f32 %v499, %v492
    %501 = vadd.xlane.f32.xlu0 %v500
    %v502 = vpop.xlane.xlu0 %501
    %v503 = vmul.f32 %v502, %v63
    %v504 = vmul.f32 %v419, %v419
    %v505 = vmul.f32 %v421, %v421
    %v506 = vmul.f32 %v490, %v490
    %v507 = vmul.f32 %v492, %v492
    %v508 = vadd.f32 %v504, %v505
    %v509 = vadd.f32 %v508, %v506
    %v510 = vadd.f32 %v509, %v507
    %511 = vadd.xlane.f32.xlu0 %v510
    %v512 = vpop.xlane.xlu0 %511
    %v513 = vmul.f32 %v512, %v63
    %v514 = vsub.f32 %v419, %v503
    %v515 = vsub.f32 %v421, %v503
    %v516 = vsub.f32 %v490, %v503
    %v517 = vsub.f32 %v492, %v503
    %v518 = vmul.f32 %v503, %v503
    %v519 = vsub.f32 %v513, %v518
    %v520 = vadd.f32 %v519, 1e-05
    %v521 = vrsqrt.pop %v520
    %v522 = vmul.f32 %v514, %v521
    %v523 = vmul.f32 %v515, %v521
    %v524 = vmul.f32 %v516, %v521
    %v525 = vmul.f32 %v517, %v521
    %v526 = vmax.f32 %v522, 0.0
    %v527 = vmax.f32 %v523, 0.0
    %v528 = vmax.f32 %v524, 0.0
    %v529 = vmax.f32 %v525, 0.0
    %v530 = vld [vmem:[%s3] sm:$0xff]
    %v531 = vld [vmem:[#allocation2] sm:$0xff]
    %v532 = vld [vmem:[#allocation2 + $0x8] sm:$0xff]
    %v533 = vld [vmem:[#allocation2 + $0x10] sm:$0xff]
    %v534 = vld [vmem:[#allocation2 + $0x18] sm:$0xff]
    %v535 = vld [vmem:[#allocation2 + $0x20] sm:$0xff]
    %v536 = vld [vmem:[#allocation2 + $0x28] sm:$0xff]
    %v537 = vld [vmem:[#allocation2 + $0x30] sm:$0xff]
    %v538 = vld [vmem:[#allocation2 + $0x38] sm:$0xff]
    %v539 = vld [vmem:[#allocation2 + $0x40] sm:$0xff]
    %v540 = vld [vmem:[#allocation2 + $0x48] sm:$0xff]
    %v541 = vld [vmem:[#allocation2 + $0x50] sm:$0xff]
    %v542 = vld [vmem:[#allocation2 + $0x58] sm:$0xff]
    %v543 = vld [vmem:[#allocation2 + $0x60] sm:$0xff]
    %v544 = vld [vmem:[#allocation2 + $0x68] sm:$0xff]
    %v545 = vld [vmem:[#allocation2 + $0x70] sm:$0xff]
    %v546 = vld [vmem:[#allocation2 + $0x78] sm:$0xff]
    %v547 = vld [vmem:[#allocation2 + $0x80] sm:$0xff]
    %v548 = vld [vmem:[#allocation2 + $0x88] sm:$0xff]
    %v549 = vld [vmem:[#allocation2 + $0x90] sm:$0xff]
    %v550 = vld [vmem:[#allocation2 + $0x98] sm:$0xff]
    %v551 = vld [vmem:[#allocation2 + $0xa0] sm:$0xff]
    %v552 = vld [vmem:[#allocation2 + $0xa8] sm:$0xff]
    %v553 = vld [vmem:[#allocation2 + $0xb0] sm:$0xff]
    %v554 = vld [vmem:[#allocation2 + $0xb8] sm:$0xff]
    %v555 = vld [vmem:[#allocation2 + $0xc0] sm:$0xff]
    %v556 = vld [vmem:[#allocation2 + $0xc8] sm:$0xff]
    %v557 = vld [vmem:[#allocation2 + $0xd0] sm:$0xff]
    %v558 = vld [vmem:[#allocation2 + $0xd8] sm:$0xff]
    %v559 = vld [vmem:[#allocation2 + $0xe0] sm:$0xff]
    %v560 = vld [vmem:[#allocation2 + $0xe8] sm:$0xff]
    %v561 = vld [vmem:[#allocation2 + $0xf0] sm:$0xff]
    %v562 = vld [vmem:[#allocation2 + $0xf8] sm:$0xff]
    %v563 = vld [vmem:[#allocation2 + $0x100] sm:$0xff]
    %v564 = vld [vmem:[#allocation2 + $0x108] sm:$0xff]
    %v565 = vld [vmem:[#allocation2 + $0x110] sm:$0xff]
    %v566 = vld [vmem:[#allocation2 + $0x118] sm:$0xff]
    %567 = vrot.lane.b32.xlu0 %v526, 17
    %v568 = vpop.permute.xlu0 %567
    %569 = vrot.lane.b32.xlu0 %v527, 17
    %v570 = vpop.permute.xlu0 %569
    %571 = vrot.lane.b32.xlu0 %v528, 17
    %v572 = vpop.permute.xlu0 %571
    %573 = vrot.lane.b32.xlu0 %v529, 17
    %v574 = vpop.permute.xlu0 %573
    %v575 = vsel %vm101, %v572, %v574
    %v576 = vsel %vm101, %v570, %v572
    %v577 = vsel %vm101, %v568, %v570
    %v578 = vsel %vm101, %v574, %v568
    %v579 = vld [vmem:[#allocation6] sm:$0xff]
    %v580 = vld [vmem:[#allocation6 + $0x8] sm:$0xff]
    %v581 = vld [vmem:[#allocation6 + $0x10] sm:$0xff]
    %v582 = vld [vmem:[#allocation6 + $0x18] sm:$0xff]
    %v583 = vmul.f32 %v578, %v579
    %v584 = vmul.f32 %v577, %v580
    %v585 = vmul.f32 %v576, %v581
    %v586 = vmul.f32 %v575, %v582
    %588 = vrot.lane.b32.xlu0 %v530, 56
    %v589 = vpop.permute.xlu0 %588
    %vm590 = vcmask 64512
    %v591 = vsel %vm590, %v589, 0
    %593 = vmatprep.subr.mxu0 %v584
    %594 = vmatpush1.msra.mxu0 %v583
    %595 = vmatprep.subr.mxu0 0.0
    %596 = vmatpush1.msra.mxu0 0.0
    %597 = vmatprep.subr.mxu0 0.0
    %598 = vmatpush1.msra.mxu0 0.0
    %599 = vmatprep.subr.mxu0 0.0
    %600 = vmatpush1.msra.mxu0 0.0
    %601 = vmatprep.subr.mxu0 0.0
    %602 = vmatpush1.msra.mxu0 0.0
    %603 = vmatprep.subr.mxu0 0.0
    %604 = vmatpush1.msra.mxu0 0.0
    %605 = vmatprep.subr.mxu0 0.0
    %606 = vmatpush1.msra.mxu0 0.0
    %607 = vmatprep.subr.mxu0 0.0
    %608 = vmatpush1.msra.mxu0 0.0
    %609 = vmatprep.subr.mxu0 0.0
    %610 = vmatpush1.msra.mxu0 0.0
    %611 = vmatprep.subr.mxu0 0.0
    %612 = vmatpush1.msra.mxu0 0.0
    %613 = vmatprep.subr.mxu0 0.0
    %614 = vmatpush1.msra.mxu0 0.0
    %615 = vmatprep.subr.mxu0 0.0
    %616 = vmatpush1.msra.mxu0 0.0
    %617 = vmatprep.subr.mxu0 0.0
    %618 = vmatpush1.msra.mxu0 0.0
    %619 = vmatprep.subr.mxu0 0.0
    %620 = vmatpush1.msra.mxu0 0.0
    %621 = vmatprep.subr.mxu0 0.0
    %622 = vmatpush1.msra.mxu0 0.0
    %623 = vmatprep.subr.mxu0 0.0
    %624 = vmatpush1.msra.mxu0 0.0
    %625 = vmatprep.subr.mxu0 0.0
    %626 = vmatpush1.msra.mxu0 0.0
    %627 = vmatprep.subr.mxu0 0.0
    %628 = vmatpush1.msra.mxu0 0.0
    %629 = vmatprep.subr.mxu0 0.0
    %630 = vmatpush1.msra.mxu0 0.0
    %631 = vmatprep.subr.mxu0 0.0
    %632 = vmatpush1.msra.mxu0 0.0
    %633 = vmatprep.subr.mxu0 0.0
    %634 = vmatpush1.msra.mxu0 0.0
    %635 = vmatprep.subr.mxu0 0.0
    %636 = vmatpush1.msra.mxu0 0.0
    %637 = vmatprep.subr.mxu0 0.0
    %638 = vmatpush1.msra.mxu0 0.0
    %639 = vmatprep.subr.mxu0 0.0
    %640 = vmatpush1.msra.mxu0 0.0
    %641 = vmatprep.subr.mxu0 0.0
    %642 = vmatpush1.msra.mxu0 0.0
    %643 = vmatprep.subr.mxu0 0.0
    %644 = vmatpush1.msra.mxu0 0.0
    %645 = vmatprep.subr.mxu0 0.0
    %646 = vmatpush1.msra.mxu0 0.0
    %647 = vmatprep.subr.mxu0 0.0
    %648 = vmatpush1.msra.mxu0 0.0
    %649 = vmatprep.subr.mxu0 0.0
    %650 = vmatpush1.msra.mxu0 0.0
    %651 = vmatprep.subr.mxu0 0.0
    %652 = vmatpush1.msra.mxu0 0.0
    %653 = vmatprep.subr.mxu0 0.0
    %654 = vmatpush1.msra.mxu0 0.0
    %655 = vmatprep.subr.mxu0 0.0
    %656 = vmatpush1.msra.mxu0 0.0
    %657 = vmatprep.mubr.f32.mxu0 0.0
    %658 = vmatmul.mubr.f32.gmra.mrb[0].mxu0 %v591
    %v659 = vpop.f32.mrb[0].mxu0
    %v660 = vadd.f32 0.0, %v659
    %v661 = vpop.f32.mrb[0].mxu0
    %v662 = vadd.f32 0.0, %v661
    %663 = vdwg.mxu0
    %664 = vmatprep.subr.mxu0 %v586
    %665 = vmatpush1.msra.mxu0 %v585
    %666 = vmatprep.subr.mxu0 0.0
    %667 = vmatpush1.msra.mxu0 0.0
    %668 = vmatprep.subr.mxu0 0.0
    %669 = vmatpush1.msra.mxu0 0.0
    %670 = vmatprep.subr.mxu0 0.0
    %671 = vmatpush1.msra.mxu0 0.0
    %672 = vmatprep.subr.mxu0 0.0
    %673 = vmatpush1.msra.mxu0 0.0
    %674 = vmatprep.subr.mxu0 0.0
    %675 = vmatpush1.msra.mxu0 0.0
    %676 = vmatprep.subr.mxu0 0.0
    %677 = vmatpush1.msra.mxu0 0.0
    %678 = vmatprep.subr.mxu0 0.0
    %679 = vmatpush1.msra.mxu0 0.0
    %680 = vmatprep.subr.mxu0 0.0
    %681 = vmatpush1.msra.mxu0 0.0
    %682 = vmatprep.subr.mxu0 0.0
    %683 = vmatpush1.msra.mxu0 0.0
    %684 = vmatprep.subr.mxu0 0.0
    %685 = vmatpush1.msra.mxu0 0.0
    %686 = vmatprep.subr.mxu0 0.0
    %687 = vmatpush1.msra.mxu0 0.0
    %688 = vmatprep.subr.mxu0 0.0
    %689 = vmatpush1.msra.mxu0 0.0
    %690 = vmatprep.subr.mxu0 0.0
    %691 = vmatpush1.msra.mxu0 0.0
    %692 = vmatprep.subr.mxu0 0.0
    %693 = vmatpush1.msra.mxu0 0.0
    %694 = vmatprep.subr.mxu0 0.0
    %695 = vmatpush1.msra.mxu0 0.0
    %696 = vmatprep.subr.mxu0 0.0
    %697 = vmatpush1.msra.mxu0 0.0
    %698 = vmatprep.subr.mxu0 0.0
    %699 = vmatpush1.msra.mxu0 0.0
    %700 = vmatprep.subr.mxu0 0.0
    %701 = vmatpush1.msra.mxu0 0.0
    %702 = vmatprep.subr.mxu0 0.0
    %703 = vmatpush1.msra.mxu0 0.0
    %704 = vmatprep.subr.mxu0 0.0
    %705 = vmatpush1.msra.mxu0 0.0
    %706 = vmatprep.subr.mxu0 0.0
    %707 = vmatpush1.msra.mxu0 0.0
    %708 = vmatprep.subr.mxu0 0.0
    %709 = vmatpush1.msra.mxu0 0.0
    %710 = vmatprep.subr.mxu0 0.0
    %711 = vmatpush1.msra.mxu0 0.0
    %712 = vmatprep.subr.mxu0 0.0
    %713 = vmatpush1.msra.mxu0 0.0
    %714 = vmatprep.subr.mxu0 0.0
    %715 = vmatpush1.msra.mxu0 0.0
    %716 = vmatprep.subr.mxu0 0.0
    %717 = vmatpush1.msra.mxu0 0.0
    %718 = vmatprep.subr.mxu0 0.0
    %719 = vmatpush1.msra.mxu0 0.0
    %720 = vmatprep.subr.mxu0 0.0
    %721 = vmatpush1.msra.mxu0 0.0
    %722 = vmatprep.subr.mxu0 0.0
    %723 = vmatpush1.msra.mxu0 0.0
    %724 = vmatprep.subr.mxu0 0.0
    %725 = vmatpush1.msra.mxu0 0.0
    %726 = vmatprep.subr.mxu0 0.0
    %727 = vmatpush1.msra.mxu0 0.0
    %728 = vmatprep.mubr.f32.mxu0 0.0
    %729 = vmatmul.mubr.f32.gmra.mrb[0].mxu0 %v591
    %v730 = vpop.f32.mrb[0].mxu0
    %v731 = vadd.f32 0.0, %v730
    %v732 = vpop.f32.mrb[0].mxu0
    %v733 = vadd.f32 0.0, %v732
    %734 = vdwg.mxu0
    %v735 = vsel %vm348, %v530, 0
    %737 = vmatprep.subr.mxu0 %v532
    %738 = vmatpush1.msra.mxu0 %v531
    %739 = vmatprep.subr.mxu0 %v536
    %740 = vmatpush1.msra.mxu0 %v535
    %741 = vmatprep.subr.mxu0 %v540
    %742 = vmatpush1.msra.mxu0 %v539
    %743 = vmatprep.subr.mxu0 %v544
    %744 = vmatpush1.msra.mxu0 %v543
    %745 = vmatprep.subr.mxu0 %v548
    %746 = vmatpush1.msra.mxu0 %v547
    %747 = vmatprep.subr.mxu0 %v552
    %748 = vmatpush1.msra.mxu0 %v551
    %749 = vmatprep.subr.mxu0 %v556
    %750 = vmatpush1.msra.mxu0 %v555
    %751 = vmatprep.subr.mxu0 %v560
    %752 = vmatpush1.msra.mxu0 %v559
    %753 = vmatprep.subr.mxu0 %v564
    %754 = vmatpush1.msra.mxu0 %v563
    %755 = vmatprep.subr.mxu0 0.0
    %756 = vmatpush1.msra.mxu0 0.0
    %757 = vmatprep.subr.mxu0 0.0
    %758 = vmatpush1.msra.mxu0 0.0
    %759 = vmatprep.subr.mxu0 0.0
    %760 = vmatpush1.msra.mxu0 0.0
    %761 = vmatprep.subr.mxu0 0.0
    %762 = vmatpush1.msra.mxu0 0.0
    %763 = vmatprep.subr.mxu0 0.0
    %764 = vmatpush1.msra.mxu0 0.0
    %765 = vmatprep.subr.mxu0 0.0
    %766 = vmatpush1.msra.mxu0 0.0
    %767 = vmatprep.subr.mxu0 0.0
    %768 = vmatpush1.msra.mxu0 0.0
    %769 = vmatprep.subr.mxu0 0.0
    %770 = vmatpush1.msra.mxu0 0.0
    %771 = vmatprep.subr.mxu0 0.0
    %772 = vmatpush1.msra.mxu0 0.0
    %773 = vmatprep.subr.mxu0 0.0
    %774 = vmatpush1.msra.mxu0 0.0
    %775 = vmatprep.subr.mxu0 0.0
    %776 = vmatpush1.msra.mxu0 0.0
    %777 = vmatprep.subr.mxu0 0.0
    %778 = vmatpush1.msra.mxu0 0.0
    %779 = vmatprep.subr.mxu0 0.0
    %780 = vmatpush1.msra.mxu0 0.0
    %781 = vmatprep.subr.mxu0 0.0
    %782 = vmatpush1.msra.mxu0 0.0
    %783 = vmatprep.subr.mxu0 0.0
    %784 = vmatpush1.msra.mxu0 0.0
    %785 = vmatprep.subr.mxu0 0.0
    %786 = vmatpush1.msra.mxu0 0.0
    %787 = vmatprep.subr.mxu0 0.0
    %788 = vmatpush1.msra.mxu0 0.0
    %789 = vmatprep.subr.mxu0 0.0
    %790 = vmatpush1.msra.mxu0 0.0
    %791 = vmatprep.subr.mxu0 0.0
    %792 = vmatpush1.msra.mxu0 0.0
    %793 = vmatprep.subr.mxu0 0.0
    %794 = vmatpush1.msra.mxu0 0.0
    %795 = vmatprep.subr.mxu0 0.0
    %796 = vmatpush1.msra.mxu0 0.0
    %797 = vmatprep.subr.mxu0 0.0
    %798 = vmatpush1.msra.mxu0 0.0
    %799 = vmatprep.subr.mxu0 0.0
    %800 = vmatpush1.msra.mxu0 0.0
    %801 = vmatprep.mubr.f32.mxu0 0.0
    %802 = vmatmul.mubr.f32.gmra.mrb[0].mxu0 %v735
    %v803 = vpop.f32.mrb[0].mxu0
    %v804 = vadd.f32 %v660, %v803
    %v805 = vpop.f32.mrb[0].mxu0
    %v806 = vadd.f32 %v662, %v805
    %807 = vdwg.mxu0
    %808 = vmatprep.subr.mxu0 %v534
    %809 = vmatpush1.msra.mxu0 %v533
    %810 = vmatprep.subr.mxu0 %v538
    %811 = vmatpush1.msra.mxu0 %v537
    %812 = vmatprep.subr.mxu0 %v542
    %813 = vmatpush1.msra.mxu0 %v541
    %814 = vmatprep.subr.mxu0 %v546
    %815 = vmatpush1.msra.mxu0 %v545
    %816 = vmatprep.subr.mxu0 %v550
    %817 = vmatpush1.msra.mxu0 %v549
    %818 = vmatprep.subr.mxu0 %v554
    %819 = vmatpush1.msra.mxu0 %v553
    %820 = vmatprep.subr.mxu0 %v558
    %821 = vmatpush1.msra.mxu0 %v557
    %822 = vmatprep.subr.mxu0 %v562
    %823 = vmatpush1.msra.mxu0 %v561
    %824 = vmatprep.subr.mxu0 %v566
    %825 = vmatpush1.msra.mxu0 %v565
    %826 = vmatprep.subr.mxu0 0.0
    %827 = vmatpush1.msra.mxu0 0.0
    %828 = vmatprep.subr.mxu0 0.0
    %829 = vmatpush1.msra.mxu0 0.0
    %830 = vmatprep.subr.mxu0 0.0
    %831 = vmatpush1.msra.mxu0 0.0
    %832 = vmatprep.subr.mxu0 0.0
    %833 = vmatpush1.msra.mxu0 0.0
    %834 = vmatprep.subr.mxu0 0.0
    %835 = vmatpush1.msra.mxu0 0.0
    %836 = vmatprep.subr.mxu0 0.0
    %837 = vmatpush1.msra.mxu0 0.0
    %838 = vmatprep.subr.mxu0 0.0
    %839 = vmatpush1.msra.mxu0 0.0
    %840 = vmatprep.subr.mxu0 0.0
    %841 = vmatpush1.msra.mxu0 0.0
    %842 = vmatprep.subr.mxu0 0.0
    %843 = vmatpush1.msra.mxu0 0.0
    %844 = vmatprep.subr.mxu0 0.0
    %845 = vmatpush1.msra.mxu0 0.0
    %846 = vmatprep.subr.mxu0 0.0
    %847 = vmatpush1.msra.mxu0 0.0
    %848 = vmatprep.subr.mxu0 0.0
    %849 = vmatpush1.msra.mxu0 0.0
    %850 = vmatprep.subr.mxu0 0.0
    %851 = vmatpush1.msra.mxu0 0.0
    %852 = vmatprep.subr.mxu0 0.0
    %853 = vmatpush1.msra.mxu0 0.0
    %854 = vmatprep.subr.mxu0 0.0
    %855 = vmatpush1.msra.mxu0 0.0
    %856 = vmatprep.subr.mxu0 0.0
    %857 = vmatpush1.msra.mxu0 0.0
    %858 = vmatprep.subr.mxu0 0.0
    %859 = vmatpush1.msra.mxu0 0.0
    %860 = vmatprep.subr.mxu0 0.0
    %861 = vmatpush1.msra.mxu0 0.0
    %862 = vmatprep.subr.mxu0 0.0
    %863 = vmatpush1.msra.mxu0 0.0
    %864 = vmatprep.subr.mxu0 0.0
    %865 = vmatpush1.msra.mxu0 0.0
    %866 = vmatprep.subr.mxu0 0.0
    %867 = vmatpush1.msra.mxu0 0.0
    %868 = vmatprep.subr.mxu0 0.0
    %869 = vmatpush1.msra.mxu0 0.0
    %870 = vmatprep.subr.mxu0 0.0
    %871 = vmatpush1.msra.mxu0 0.0
    %872 = vmatprep.mubr.f32.mxu0 0.0
    %873 = vmatmul.mubr.f32.gmra.mrb[0].mxu0 %v735
    %v874 = vpop.f32.mrb[0].mxu0
    %v875 = vadd.f32 %v731, %v874
    %v876 = vpop.f32.mrb[0].mxu0
    %v877 = vadd.f32 %v733, %v876
    %878 = vdwg.mxu0
    %879 = vrot.lane.b32.xlu0 %v526, 16
    %v880 = vpop.permute.xlu0 %879
    %881 = vrot.lane.b32.xlu0 %v527, 16
    %v882 = vpop.permute.xlu0 %881
    %883 = vrot.lane.b32.xlu0 %v528, 16
    %v884 = vpop.permute.xlu0 %883
    %885 = vrot.lane.b32.xlu0 %v529, 16
    %v886 = vpop.permute.xlu0 %885
    %v887 = vsel %vm126, %v884, %v886
    %v888 = vsel %vm126, %v882, %v884
    %v889 = vsel %vm126, %v880, %v882
    %v890 = vsel %vm126, %v886, %v880
    %v891 = vld [vmem:[#allocation6 + $0x20] sm:$0xff]
    %v892 = vld [vmem:[#allocation6 + $0x28] sm:$0xff]
    %v893 = vld [vmem:[#allocation6 + $0x30] sm:$0xff]
    %v894 = vld [vmem:[#allocation6 + $0x38] sm:$0xff]
    %v895 = vmul.f32 %v890, %v891
    %v896 = vmul.f32 %v889, %v892
    %v897 = vmul.f32 %v888, %v893
    %v898 = vmul.f32 %v887, %v894
    %899 = vrot.lane.b32.xlu0 %v530, 48
    %v900 = vpop.permute.xlu0 %899
    %v901 = vsel %vm590, %v900, 0
    %903 = vmatprep.subr.mxu0 %v896
    %904 = vmatpush1.msra.mxu0 %v895
    %905 = vmatprep.subr.mxu0 0.0
    %906 = vmatpush1.msra.mxu0 0.0
    %907 = vmatprep.subr.mxu0 0.0
    %908 = vmatpush1.msra.mxu0 0.0
    %909 = vmatprep.subr.mxu0 0.0
    %910 = vmatpush1.msra.mxu0 0.0
    %911 = vmatprep.subr.mxu0 0.0
    %912 = vmatpush1.msra.mxu0 0.0
    %913 = vmatprep.subr.mxu0 0.0
    %914 = vmatpush1.msra.mxu0 0.0
    %915 = vmatprep.subr.mxu0 0.0
    %916 = vmatpush1.msra.mxu0 0.0
    %917 = vmatprep.subr.mxu0 0.0
    %918 = vmatpush1.msra.mxu0 0.0
    %919 = vmatprep.subr.mxu0 0.0
    %920 = vmatpush1.msra.mxu0 0.0
    %921 = vmatprep.subr.mxu0 0.0
    %922 = vmatpush1.msra.mxu0 0.0
    %923 = vmatprep.subr.mxu0 0.0
    %924 = vmatpush1.msra.mxu0 0.0
    %925 = vmatprep.subr.mxu0 0.0
    %926 = vmatpush1.msra.mxu0 0.0
    %927 = vmatprep.subr.mxu0 0.0
    %928 = vmatpush1.msra.mxu0 0.0
    %929 = vmatprep.subr.mxu0 0.0
    %930 = vmatpush1.msra.mxu0 0.0
    %931 = vmatprep.subr.mxu0 0.0
    %932 = vmatpush1.msra.mxu0 0.0
    %933 = vmatprep.subr.mxu0 0.0
    %934 = vmatpush1.msra.mxu0 0.0
    %935 = vmatprep.subr.mxu0 0.0
    %936 = vmatpush1.msra.mxu0 0.0
    %937 = vmatprep.subr.mxu0 0.0
    %938 = vmatpush1.msra.mxu0 0.0
    %939 = vmatprep.subr.mxu0 0.0
    %940 = vmatpush1.msra.mxu0 0.0
    %941 = vmatprep.subr.mxu0 0.0
    %942 = vmatpush1.msra.mxu0 0.0
    %943 = vmatprep.subr.mxu0 0.0
    %944 = vmatpush1.msra.mxu0 0.0
    %945 = vmatprep.subr.mxu0 0.0
    %946 = vmatpush1.msra.mxu0 0.0
    %947 = vmatprep.subr.mxu0 0.0
    %948 = vmatpush1.msra.mxu0 0.0
    %949 = vmatprep.subr.mxu0 0.0
    %950 = vmatpush1.msra.mxu0 0.0
    %951 = vmatprep.subr.mxu0 0.0
    %952 = vmatpush1.msra.mxu0 0.0
    %953 = vmatprep.subr.mxu0 0.0
    %954 = vmatpush1.msra.mxu0 0.0
    %955 = vmatprep.subr.mxu0 0.0
    %956 = vmatpush1.msra.mxu0 0.0
    %957 = vmatprep.subr.mxu0 0.0
    %958 = vmatpush1.msra.mxu0 0.0
    %959 = vmatprep.subr.mxu0 0.0
    %960 = vmatpush1.msra.mxu0 0.0
    %961 = vmatprep.subr.mxu0 0.0
    %962 = vmatpush1.msra.mxu0 0.0
    %963 = vmatprep.subr.mxu0 0.0
    %964 = vmatpush1.msra.mxu0 0.0
    %965 = vmatprep.subr.mxu0 0.0
    %966 = vmatpush1.msra.mxu0 0.0
    %967 = vmatprep.mubr.f32.mxu0 0.0
    %968 = vmatmul.mubr.f32.gmra.mrb[0].mxu0 %v901
    %v969 = vpop.f32.mrb[0].mxu0
    %v970 = vadd.f32 0.0, %v969
    %v971 = vpop.f32.mrb[0].mxu0
    %v972 = vadd.f32 0.0, %v971
    %973 = vdwg.mxu0
    %974 = vmatprep.subr.mxu0 %v898
    %975 = vmatpush1.msra.mxu0 %v897
    %976 = vmatprep.subr.mxu0 0.0
    %977 = vmatpush1.msra.mxu0 0.0
    %978 = vmatprep.subr.mxu0 0.0
    %979 = vmatpush1.msra.mxu0 0.0
    %980 = vmatprep.subr.mxu0 0.0
    %981 = vmatpush1.msra.mxu0 0.0
    %982 = vmatprep.subr.mxu0 0.0
    %983 = vmatpush1.msra.mxu0 0.0
    %984 = vmatprep.subr.mxu0 0.0
    %985 = vmatpush1.msra.mxu0 0.0
    %986 = vmatprep.subr.mxu0 0.0
    %987 = vmatpush1.msra.mxu0 0.0
    %988 = vmatprep.subr.mxu0 0.0
    %989 = vmatpush1.msra.mxu0 0.0
    %990 = vmatprep.subr.mxu0 0.0
    %991 = vmatpush1.msra.mxu0 0.0
    %992 = vmatprep.subr.mxu0 0.0
    %993 = vmatpush1.msra.mxu0 0.0
    %994 = vmatprep.subr.mxu0 0.0
    %995 = vmatpush1.msra.mxu0 0.0
    %996 = vmatprep.subr.mxu0 0.0
    %997 = vmatpush1.msra.mxu0 0.0
    %998 = vmatprep.subr.mxu0 0.0
    %999 = vmatpush1.msra.mxu0 0.0
    %1000 = vmatprep.subr.mxu0 0.0
    %1001 = vmatpush1.msra.mxu0 0.0
    %1002 = vmatprep.subr.mxu0 0.0
    %1003 = vmatpush1.msra.mxu0 0.0
    %1004 = vmatprep.subr.mxu0 0.0
    %1005 = vmatpush1.msra.mxu0 0.0
    %1006 = vmatprep.subr.mxu0 0.0
    %1007 = vmatpush1.msra.mxu0 0.0
    %1008 = vmatprep.subr.mxu0 0.0
    %1009 = vmatpush1.msra.mxu0 0.0
    %1010 = vmatprep.subr.mxu0 0.0
    %1011 = vmatpush1.msra.mxu0 0.0
    %1012 = vmatprep.subr.mxu0 0.0
    %1013 = vmatpush1.msra.mxu0 0.0
    %1014 = vmatprep.subr.mxu0 0.0
    %1015 = vmatpush1.msra.mxu0 0.0
    %1016 = vmatprep.subr.mxu0 0.0
    %1017 = vmatpush1.msra.mxu0 0.0
    %1018 = vmatprep.subr.mxu0 0.0
    %1019 = vmatpush1.msra.mxu0 0.0
    %1020 = vmatprep.subr.mxu0 0.0
    %1021 = vmatpush1.msra.mxu0 0.0
    %1022 = vmatprep.subr.mxu0 0.0
    %1023 = vmatpush1.msra.mxu0 0.0
    %1024 = vmatprep.subr.mxu0 0.0
    %1025 = vmatpush1.msra.mxu0 0.0
    %1026 = vmatprep.subr.mxu0 0.0
    %1027 = vmatpush1.msra.mxu0 0.0
    %1028 = vmatprep.subr.mxu0 0.0
    %1029 = vmatpush1.msra.mxu0 0.0
    %1030 = vmatprep.subr.mxu0 0.0
    %1031 = vmatpush1.msra.mxu0 0.0
    %1032 = vmatprep.subr.mxu0 0.0
    %1033 = vmatpush1.msra.mxu0 0.0
    %1034 = vmatprep.subr.mxu0 0.0
    %1035 = vmatpush1.msra.mxu0 0.0
    %1036 = vmatprep.subr.mxu0 0.0
    %1037 = vmatpush1.msra.mxu0 0.0
    %1038 = vmatprep.mubr.f32.mxu0 0.0
    %1039 = vmatmul.mubr.f32.gmra.mrb[0].mxu0 %v901
    %v1040 = vpop.f32.mrb[0].mxu0
    %v1041 = vadd.f32 0.0, %v1040
    %v1042 = vpop.f32.mrb[0].mxu0
    %v1043 = vadd.f32 0.0, %v1042
    %1044 = vdwg.mxu0
    %v1045 = vadd.f32 %v804, %v970
    %v1046 = vadd.f32 %v806, %v972
    %v1047 = vadd.f32 %v875, %v1041
    %v1048 = vadd.f32 %v877, %v1043
    %1049 = vrot.lane.b32.xlu0 %v526, 15
    %v1050 = vpop.permute.xlu0 %1049
    %1051 = vrot.lane.b32.xlu0 %v527, 15
    %v1052 = vpop.permute.xlu0 %1051
    %1053 = vrot.lane.b32.xlu0 %v528, 15
    %v1054 = vpop.permute.xlu0 %1053
    %1055 = vrot.lane.b32.xlu0 %v529, 15
    %v1056 = vpop.permute.xlu0 %1055
    %v1057 = vsel %vm151, %v1054, %v1056
    %v1058 = vsel %vm151, %v1052, %v1054
    %v1059 = vsel %vm151, %v1050, %v1052
    %v1060 = vsel %vm151, %v1056, %v1050
    %v1061 = vld [vmem:[#allocation6 + $0x40] sm:$0xff]
    %v1062 = vld [vmem:[#allocation6 + $0x48] sm:$0xff]
    %v1063 = vld [vmem:[#allocation6 + $0x50] sm:$0xff]
    %v1064 = vld [vmem:[#allocation6 + $0x58] sm:$0xff]
    %v1065 = vmul.f32 %v1060, %v1061
    %v1066 = vmul.f32 %v1059, %v1062
    %v1067 = vmul.f32 %v1058, %v1063
    %v1068 = vmul.f32 %v1057, %v1064
    %1069 = vrot.lane.b32.xlu0 %v530, 40
    %v1070 = vpop.permute.xlu0 %1069
    %v1071 = vsel %vm590, %v1070, 0
    %1073 = vmatprep.subr.mxu0 %v1066
    %1074 = vmatpush1.msra.mxu0 %v1065
    %1075 = vmatprep.subr.mxu0 0.0
    %1076 = vmatpush1.msra.mxu0 0.0
    %1077 = vmatprep.subr.mxu0 0.0
    %1078 = vmatpush1.msra.mxu0 0.0
    %1079 = vmatprep.subr.mxu0 0.0
    %1080 = vmatpush1.msra.mxu0 0.0
    %1081 = vmatprep.subr.mxu0 0.0
    %1082 = vmatpush1.msra.mxu0 0.0
    %1083 = vmatprep.subr.mxu0 0.0
    %1084 = vmatpush1.msra.mxu0 0.0
    %1085 = vmatprep.subr.mxu0 0.0
    %1086 = vmatpush1.msra.mxu0 0.0
    %1087 = vmatprep.subr.mxu0 0.0
    %1088 = vmatpush1.msra.mxu0 0.0
    %1089 = vmatprep.subr.mxu0 0.0
    %1090 = vmatpush1.msra.mxu0 0.0
    %1091 = vmatprep.subr.mxu0 0.0
    %1092 = vmatpush1.msra.mxu0 0.0
    %1093 = vmatprep.subr.mxu0 0.0
    %1094 = vmatpush1.msra.mxu0 0.0
    %1095 = vmatprep.subr.mxu0 0.0
    %1096 = vmatpush1.msra.mxu0 0.0
    %1097 = vmatprep.subr.mxu0 0.0
    %1098 = vmatpush1.msra.mxu0 0.0
    %1099 = vmatprep.subr.mxu0 0.0
    %1100 = vmatpush1.msra.mxu0 0.0
    %1101 = vmatprep.subr.mxu0 0.0
    %1102 = vmatpush1.msra.mxu0 0.0
    %1103 = vmatprep.subr.mxu0 0.0
    %1104 = vmatpush1.msra.mxu0 0.0
    %1105 = vmatprep.subr.mxu0 0.0
    %1106 = vmatpush1.msra.mxu0 0.0
    %1107 = vmatprep.subr.mxu0 0.0
    %1108 = vmatpush1.msra.mxu0 0.0
    %1109 = vmatprep.subr.mxu0 0.0
    %1110 = vmatpush1.msra.mxu0 0.0
    %1111 = vmatprep.subr.mxu0 0.0
    %1112 = vmatpush1.msra.mxu0 0.0
    %1113 = vmatprep.subr.mxu0 0.0
    %1114 = vmatpush1.msra.mxu0 0.0
    %1115 = vmatprep.subr.mxu0 0.0
    %1116 = vmatpush1.msra.mxu0 0.0
    %1117 = vmatprep.subr.mxu0 0.0
    %1118 = vmatpush1.msra.mxu0 0.0
    %1119 = vmatprep.subr.mxu0 0.0
    %1120 = vmatpush1.msra.mxu0 0.0
    %1121 = vmatprep.subr.mxu0 0.0
    %1122 = vmatpush1.msra.mxu0 0.0
    %1123 = vmatprep.subr.mxu0 0.0
    %1124 = vmatpush1.msra.mxu0 0.0
    %1125 = vmatprep.subr.mxu0 0.0
    %1126 = vmatpush1.msra.mxu0 0.0
    %1127 = vmatprep.subr.mxu0 0.0
    %1128 = vmatpush1.msra.mxu0 0.0
    %1129 = vmatprep.subr.mxu0 0.0
    %1130 = vmatpush1.msra.mxu0 0.0
    %1131 = vmatprep.subr.mxu0 0.0
    %1132 = vmatpush1.msra.mxu0 0.0
    %1133 = vmatprep.subr.mxu0 0.0
    %1134 = vmatpush1.msra.mxu0 0.0
    %1135 = vmatprep.subr.mxu0 0.0
    %1136 = vmatpush1.msra.mxu0 0.0
    %1137 = vmatprep.mubr.f32.mxu0 0.0
    %1138 = vmatmul.mubr.f32.gmra.mrb[0].mxu0 %v1071
    %v1139 = vpop.f32.mrb[0].mxu0
    %v1140 = vadd.f32 0.0, %v1139
    %v1141 = vpop.f32.mrb[0].mxu0
    %v1142 = vadd.f32 0.0, %v1141
    %1143 = vdwg.mxu0
    %1144 = vmatprep.subr.mxu0 %v1068
    %1145 = vmatpush1.msra.mxu0 %v1067
    %1146 = vmatprep.subr.mxu0 0.0
    %1147 = vmatpush1.msra.mxu0 0.0
    %1148 = vmatprep.subr.mxu0 0.0
    %1149 = vmatpush1.msra.mxu0 0.0
    %1150 = vmatprep.subr.mxu0 0.0
    %1151 = vmatpush1.msra.mxu0 0.0
    %1152 = vmatprep.subr.mxu0 0.0
    %1153 = vmatpush1.msra.mxu0 0.0
    %1154 = vmatprep.subr.mxu0 0.0
    %1155 = vmatpush1.msra.mxu0 0.0
    %1156 = vmatprep.subr.mxu0 0.0
    %1157 = vmatpush1.msra.mxu0 0.0
    %1158 = vmatprep.subr.mxu0 0.0
    %1159 = vmatpush1.msra.mxu0 0.0
    %1160 = vmatprep.subr.mxu0 0.0
    %1161 = vmatpush1.msra.mxu0 0.0
    %1162 = vmatprep.subr.mxu0 0.0
    %1163 = vmatpush1.msra.mxu0 0.0
    %1164 = vmatprep.subr.mxu0 0.0
    %1165 = vmatpush1.msra.mxu0 0.0
    %1166 = vmatprep.subr.mxu0 0.0
    %1167 = vmatpush1.msra.mxu0 0.0
    %1168 = vmatprep.subr.mxu0 0.0
    %1169 = vmatpush1.msra.mxu0 0.0
    %1170 = vmatprep.subr.mxu0 0.0
    %1171 = vmatpush1.msra.mxu0 0.0
    %1172 = vmatprep.subr.mxu0 0.0
    %1173 = vmatpush1.msra.mxu0 0.0
    %1174 = vmatprep.subr.mxu0 0.0
    %1175 = vmatpush1.msra.mxu0 0.0
    %1176 = vmatprep.subr.mxu0 0.0
    %1177 = vmatpush1.msra.mxu0 0.0
    %1178 = vmatprep.subr.mxu0 0.0
    %1179 = vmatpush1.msra.mxu0 0.0
    %1180 = vmatprep.subr.mxu0 0.0
    %1181 = vmatpush1.msra.mxu0 0.0
    %1182 = vmatprep.subr.mxu0 0.0
    %1183 = vmatpush1.msra.mxu0 0.0
    %1184 = vmatprep.subr.mxu0 0.0
    %1185 = vmatpush1.msra.mxu0 0.0
    %1186 = vmatprep.subr.mxu0 0.0
    %1187 = vmatpush1.msra.mxu0 0.0
    %1188 = vmatprep.subr.mxu0 0.0
    %1189 = vmatpush1.msra.mxu0 0.0
    %1190 = vmatprep.subr.mxu0 0.0
    %1191 = vmatpush1.msra.mxu0 0.0
    %1192 = vmatprep.subr.mxu0 0.0
    %1193 = vmatpush1.msra.mxu0 0.0
    %1194 = vmatprep.subr.mxu0 0.0
    %1195 = vmatpush1.msra.mxu0 0.0
    %1196 = vmatprep.subr.mxu0 0.0
    %1197 = vmatpush1.msra.mxu0 0.0
    %1198 = vmatprep.subr.mxu0 0.0
    %1199 = vmatpush1.msra.mxu0 0.0
    %1200 = vmatprep.subr.mxu0 0.0
    %1201 = vmatpush1.msra.mxu0 0.0
    %1202 = vmatprep.subr.mxu0 0.0
    %1203 = vmatpush1.msra.mxu0 0.0
    %1204 = vmatprep.subr.mxu0 0.0
    %1205 = vmatpush1.msra.mxu0 0.0
    %1206 = vmatprep.subr.mxu0 0.0
    %1207 = vmatpush1.msra.mxu0 0.0
    %1208 = vmatprep.mubr.f32.mxu0 0.0
    %1209 = vmatmul.mubr.f32.gmra.mrb[0].mxu0 %v1071
    %v1210 = vpop.f32.mrb[0].mxu0
    %v1211 = vadd.f32 0.0, %v1210
    %v1212 = vpop.f32.mrb[0].mxu0
    %v1213 = vadd.f32 0.0, %v1212
    %1214 = vdwg.mxu0
    %v1215 = vadd.f32 %v1045, %v1140
    %v1216 = vadd.f32 %v1046, %v1142
    %v1217 = vadd.f32 %v1047, %v1211
    %v1218 = vadd.f32 %v1048, %v1213
    %1219 = vrot.lane.b32.xlu0 %v526, 1
    %v1220 = vpop.permute.xlu0 %1219
    %1221 = vrot.lane.b32.xlu0 %v527, 1
    %v1222 = vpop.permute.xlu0 %1221
    %1223 = vrot.lane.b32.xlu0 %v528, 1
    %v1224 = vpop.permute.xlu0 %1223
    %1225 = vrot.lane.b32.xlu0 %v529, 1
    %v1226 = vpop.permute.xlu0 %1225
    %v1227 = vsel %vm176, %v1224, %v1226
    %v1228 = vsel %vm176, %v1222, %v1224
    %v1229 = vsel %vm176, %v1220, %v1222
    %v1230 = vsel %vm176, %v1226, %v1220
    %v1231 = vld [vmem:[#allocation6 + $0x60] sm:$0xff]
    %v1232 = vld [vmem:[#allocation6 + $0x68] sm:$0xff]
    %v1233 = vld [vmem:[#allocation6 + $0x70] sm:$0xff]
    %v1234 = vld [vmem:[#allocation6 + $0x78] sm:$0xff]
    %v1235 = vmul.f32 %v1230, %v1231
    %v1236 = vmul.f32 %v1229, %v1232
    %v1237 = vmul.f32 %v1228, %v1233
    %v1238 = vmul.f32 %v1227, %v1234
    %1239 = vrot.lane.b32.xlu0 %v530, 32
    %v1240 = vpop.permute.xlu0 %1239
    %v1241 = vsel %vm590, %v1240, 0
    %1243 = vmatprep.subr.mxu0 %v1236
    %1244 = vmatpush1.msra.mxu0 %v1235
    %1245 = vmatprep.subr.mxu0 0.0
    %1246 = vmatpush1.msra.mxu0 0.0
    %1247 = vmatprep.subr.mxu0 0.0
    %1248 = vmatpush1.msra.mxu0 0.0
    %1249 = vmatprep.subr.mxu0 0.0
    %1250 = vmatpush1.msra.mxu0 0.0
    %1251 = vmatprep.subr.mxu0 0.0
    %1252 = vmatpush1.msra.mxu0 0.0
    %1253 = vmatprep.subr.mxu0 0.0
    %1254 = vmatpush1.msra.mxu0 0.0
    %1255 = vmatprep.subr.mxu0 0.0
    %1256 = vmatpush1.msra.mxu0 0.0
    %1257 = vmatprep.subr.mxu0 0.0
    %1258 = vmatpush1.msra.mxu0 0.0
    %1259 = vmatprep.subr.mxu0 0.0
    %1260 = vmatpush1.msra.mxu0 0.0
    %1261 = vmatprep.subr.mxu0 0.0
    %1262 = vmatpush1.msra.mxu0 0.0
    %1263 = vmatprep.subr.mxu0 0.0
    %1264 = vmatpush1.msra.mxu0 0.0
    %1265 = vmatprep.subr.mxu0 0.0
    %1266 = vmatpush1.msra.mxu0 0.0
    %1267 = vmatprep.subr.mxu0 0.0
    %1268 = vmatpush1.msra.mxu0 0.0
    %1269 = vmatprep.subr.mxu0 0.0
    %1270 = vmatpush1.msra.mxu0 0.0
    %1271 = vmatprep.subr.mxu0 0.0
    %1272 = vmatpush1.msra.mxu0 0.0
    %1273 = vmatprep.subr.mxu0 0.0
    %1274 = vmatpush1.msra.mxu0 0.0
    %1275 = vmatprep.subr.mxu0 0.0
    %1276 = vmatpush1.msra.mxu0 0.0
    %1277 = vmatprep.subr.mxu0 0.0
    %1278 = vmatpush1.msra.mxu0 0.0
    %1279 = vmatprep.subr.mxu0 0.0
    %1280 = vmatpush1.msra.mxu0 0.0
    %1281 = vmatprep.subr.mxu0 0.0
    %1282 = vmatpush1.msra.mxu0 0.0
    %1283 = vmatprep.subr.mxu0 0.0
    %1284 = vmatpush1.msra.mxu0 0.0
    %1285 = vmatprep.subr.mxu0 0.0
    %1286 = vmatpush1.msra.mxu0 0.0
    %1287 = vmatprep.subr.mxu0 0.0
    %1288 = vmatpush1.msra.mxu0 0.0
    %1289 = vmatprep.subr.mxu0 0.0
    %1290 = vmatpush1.msra.mxu0 0.0
    %1291 = vmatprep.subr.mxu0 0.0
    %1292 = vmatpush1.msra.mxu0 0.0
    %1293 = vmatprep.subr.mxu0 0.0
    %1294 = vmatpush1.msra.mxu0 0.0
    %1295 = vmatprep.subr.mxu0 0.0
    %1296 = vmatpush1.msra.mxu0 0.0
    %1297 = vmatprep.subr.mxu0 0.0
    %1298 = vmatpush1.msra.mxu0 0.0
    %1299 = vmatprep.subr.mxu0 0.0
    %1300 = vmatpush1.msra.mxu0 0.0
    %1301 = vmatprep.subr.mxu0 0.0
    %1302 = vmatpush1.msra.mxu0 0.0
    %1303 = vmatprep.subr.mxu0 0.0
    %1304 = vmatpush1.msra.mxu0 0.0
    %1305 = vmatprep.subr.mxu0 0.0
    %1306 = vmatpush1.msra.mxu0 0.0
    %1307 = vmatprep.mubr.f32.mxu0 0.0
    %1308 = vmatmul.mubr.f32.gmra.mrb[0].mxu0 %v1241
    %v1309 = vpop.f32.mrb[0].mxu0
    %v1310 = vadd.f32 0.0, %v1309
    %v1311 = vpop.f32.mrb[0].mxu0
    %v1312 = vadd.f32 0.0, %v1311
    %1313 = vdwg.mxu0
    %1314 = vmatprep.subr.mxu0 %v1238
    %1315 = vmatpush1.msra.mxu0 %v1237
    %1316 = vmatprep.subr.mxu0 0.0
    %1317 = vmatpush1.msra.mxu0 0.0
    %1318 = vmatprep.subr.mxu0 0.0
    %1319 = vmatpush1.msra.mxu0 0.0
    %1320 = vmatprep.subr.mxu0 0.0
    %1321 = vmatpush1.msra.mxu0 0.0
    %1322 = vmatprep.subr.mxu0 0.0
    %1323 = vmatpush1.msra.mxu0 0.0
    %1324 = vmatprep.subr.mxu0 0.0
    %1325 = vmatpush1.msra.mxu0 0.0
    %1326 = vmatprep.subr.mxu0 0.0
    %1327 = vmatpush1.msra.mxu0 0.0
    %1328 = vmatprep.subr.mxu0 0.0
    %1329 = vmatpush1.msra.mxu0 0.0
    %1330 = vmatprep.subr.mxu0 0.0
    %1331 = vmatpush1.msra.mxu0 0.0
    %1332 = vmatprep.subr.mxu0 0.0
    %1333 = vmatpush1.msra.mxu0 0.0
    %1334 = vmatprep.subr.mxu0 0.0
    %1335 = vmatpush1.msra.mxu0 0.0
    %1336 = vmatprep.subr.mxu0 0.0
    %1337 = vmatpush1.msra.mxu0 0.0
    %1338 = vmatprep.subr.mxu0 0.0
    %1339 = vmatpush1.msra.mxu0 0.0
    %1340 = vmatprep.subr.mxu0 0.0
    %1341 = vmatpush1.msra.mxu0 0.0
    %1342 = vmatprep.subr.mxu0 0.0
    %1343 = vmatpush1.msra.mxu0 0.0
    %1344 = vmatprep.subr.mxu0 0.0
    %1345 = vmatpush1.msra.mxu0 0.0
    %1346 = vmatprep.subr.mxu0 0.0
    %1347 = vmatpush1.msra.mxu0 0.0
    %1348 = vmatprep.subr.mxu0 0.0
    %1349 = vmatpush1.msra.mxu0 0.0
    %1350 = vmatprep.subr.mxu0 0.0
    %1351 = vmatpush1.msra.mxu0 0.0
    %1352 = vmatprep.subr.mxu0 0.0
    %1353 = vmatpush1.msra.mxu0 0.0
    %1354 = vmatprep.subr.mxu0 0.0
    %1355 = vmatpush1.msra.mxu0 0.0
    %1356 = vmatprep.subr.mxu0 0.0
    %1357 = vmatpush1.msra.mxu0 0.0
    %1358 = vmatprep.subr.mxu0 0.0
    %1359 = vmatpush1.msra.mxu0 0.0
    %1360 = vmatprep.subr.mxu0 0.0
    %1361 = vmatpush1.msra.mxu0 0.0
    %1362 = vmatprep.subr.mxu0 0.0
    %1363 = vmatpush1.msra.mxu0 0.0
    %1364 = vmatprep.subr.mxu0 0.0
    %1365 = vmatpush1.msra.mxu0 0.0
    %1366 = vmatprep.subr.mxu0 0.0
    %1367 = vmatpush1.msra.mxu0 0.0
    %1368 = vmatprep.subr.mxu0 0.0
    %1369 = vmatpush1.msra.mxu0 0.0
    %1370 = vmatprep.subr.mxu0 0.0
    %1371 = vmatpush1.msra.mxu0 0.0
    %1372 = vmatprep.subr.mxu0 0.0
    %1373 = vmatpush1.msra.mxu0 0.0
    %1374 = vmatprep.subr.mxu0 0.0
    %1375 = vmatpush1.msra.mxu0 0.0
    %1376 = vmatprep.subr.mxu0 0.0
    %1377 = vmatpush1.msra.mxu0 0.0
    %1378 = vmatprep.mubr.f32.mxu0 0.0
    %1379 = vmatmul.mubr.f32.gmra.mrb[0].mxu0 %v1241
    %v1380 = vpop.f32.mrb[0].mxu0
    %v1381 = vadd.f32 0.0, %v1380
    %v1382 = vpop.f32.mrb[0].mxu0
    %v1383 = vadd.f32 0.0, %v1382
    %1384 = vdwg.mxu0
    %v1385 = vadd.f32 %v1215, %v1310
    %v1386 = vadd.f32 %v1216, %v1312
    %v1387 = vadd.f32 %v1217, %v1381
    %v1388 = vadd.f32 %v1218, %v1383
    %v1389 = vld [vmem:[#allocation6 + $0x80] sm:$0xff]
    %v1390 = vld [vmem:[#allocation6 + $0x88] sm:$0xff]
    %v1391 = vld [vmem:[#allocation6 + $0x90] sm:$0xff]
    %v1392 = vld [vmem:[#allocation6 + $0x98] sm:$0xff]
    %v1393 = vmul.f32 %v526, %v1389
    %v1394 = vmul.f32 %v527, %v1390
    %v1395 = vmul.f32 %v528, %v1391
    %v1396 = vmul.f32 %v529, %v1392
    %1397 = vrot.lane.b32.xlu0 %v530, 24
    %v1398 = vpop.permute.xlu0 %1397
    %v1399 = vsel %vm590, %v1398, 0
    %1401 = vmatprep.subr.mxu0 %v1394
    %1402 = vmatpush1.msra.mxu0 %v1393
    %1403 = vmatprep.subr.mxu0 0.0
    %1404 = vmatpush1.msra.mxu0 0.0
    %1405 = vmatprep.subr.mxu0 0.0
    %1406 = vmatpush1.msra.mxu0 0.0
    %1407 = vmatprep.subr.mxu0 0.0
    %1408 = vmatpush1.msra.mxu0 0.0
    %1409 = vmatprep.subr.mxu0 0.0
    %1410 = vmatpush1.msra.mxu0 0.0
    %1411 = vmatprep.subr.mxu0 0.0
    %1412 = vmatpush1.msra.mxu0 0.0
    %1413 = vmatprep.subr.mxu0 0.0
    %1414 = vmatpush1.msra.mxu0 0.0
    %1415 = vmatprep.subr.mxu0 0.0
    %1416 = vmatpush1.msra.mxu0 0.0
    %1417 = vmatprep.subr.mxu0 0.0
    %1418 = vmatpush1.msra.mxu0 0.0
    %1419 = vmatprep.subr.mxu0 0.0
    %1420 = vmatpush1.msra.mxu0 0.0
    %1421 = vmatprep.subr.mxu0 0.0
    %1422 = vmatpush1.msra.mxu0 0.0
    %1423 = vmatprep.subr.mxu0 0.0
    %1424 = vmatpush1.msra.mxu0 0.0
    %1425 = vmatprep.subr.mxu0 0.0
    %1426 = vmatpush1.msra.mxu0 0.0
    %1427 = vmatprep.subr.mxu0 0.0
    %1428 = vmatpush1.msra.mxu0 0.0
    %1429 = vmatprep.subr.mxu0 0.0
    %1430 = vmatpush1.msra.mxu0 0.0
    %1431 = vmatprep.subr.mxu0 0.0
    %1432 = vmatpush1.msra.mxu0 0.0
    %1433 = vmatprep.subr.mxu0 0.0
    %1434 = vmatpush1.msra.mxu0 0.0
    %1435 = vmatprep.subr.mxu0 0.0
    %1436 = vmatpush1.msra.mxu0 0.0
    %1437 = vmatprep.subr.mxu0 0.0
    %1438 = vmatpush1.msra.mxu0 0.0
    %1439 = vmatprep.subr.mxu0 0.0
    %1440 = vmatpush1.msra.mxu0 0.0
    %1441 = vmatprep.subr.mxu0 0.0
    %1442 = vmatpush1.msra.mxu0 0.0
    %1443 = vmatprep.subr.mxu0 0.0
    %1444 = vmatpush1.msra.mxu0 0.0
    %1445 = vmatprep.subr.mxu0 0.0
    %1446 = vmatpush1.msra.mxu0 0.0
    %1447 = vmatprep.subr.mxu0 0.0
    %1448 = vmatpush1.msra.mxu0 0.0
    %1449 = vmatprep.subr.mxu0 0.0
    %1450 = vmatpush1.msra.mxu0 0.0
    %1451 = vmatprep.subr.mxu0 0.0
    %1452 = vmatpush1.msra.mxu0 0.0
    %1453 = vmatprep.subr.mxu0 0.0
    %1454 = vmatpush1.msra.mxu0 0.0
    %1455 = vmatprep.subr.mxu0 0.0
    %1456 = vmatpush1.msra.mxu0 0.0
    %1457 = vmatprep.subr.mxu0 0.0
    %1458 = vmatpush1.msra.mxu0 0.0
    %1459 = vmatprep.subr.mxu0 0.0
    %1460 = vmatpush1.msra.mxu0 0.0
    %1461 = vmatprep.subr.mxu0 0.0
    %1462 = vmatpush1.msra.mxu0 0.0
    %1463 = vmatprep.subr.mxu0 0.0
    %1464 = vmatpush1.msra.mxu0 0.0
    %1465 = vmatprep.mubr.f32.mxu0 0.0
    %1466 = vmatmul.mubr.f32.gmra.mrb[0].mxu0 %v1399
    %v1467 = vpop.f32.mrb[0].mxu0
    %v1468 = vadd.f32 0.0, %v1467
    %v1469 = vpop.f32.mrb[0].mxu0
    %v1470 = vadd.f32 0.0, %v1469
    %1471 = vdwg.mxu0
    %1472 = vmatprep.subr.mxu0 %v1396
    %1473 = vmatpush1.msra.mxu0 %v1395
    %1474 = vmatprep.subr.mxu0 0.0
    %1475 = vmatpush1.msra.mxu0 0.0
    %1476 = vmatprep.subr.mxu0 0.0
    %1477 = vmatpush1.msra.mxu0 0.0
    %1478 = vmatprep.subr.mxu0 0.0
    %1479 = vmatpush1.msra.mxu0 0.0
    %1480 = vmatprep.subr.mxu0 0.0
    %1481 = vmatpush1.msra.mxu0 0.0
    %1482 = vmatprep.subr.mxu0 0.0
    %1483 = vmatpush1.msra.mxu0 0.0
    %1484 = vmatprep.subr.mxu0 0.0
    %1485 = vmatpush1.msra.mxu0 0.0
    %1486 = vmatprep.subr.mxu0 0.0
    %1487 = vmatpush1.msra.mxu0 0.0
    %1488 = vmatprep.subr.mxu0 0.0
    %1489 = vmatpush1.msra.mxu0 0.0
    %1490 = vmatprep.subr.mxu0 0.0
    %1491 = vmatpush1.msra.mxu0 0.0
    %1492 = vmatprep.subr.mxu0 0.0
    %1493 = vmatpush1.msra.mxu0 0.0
    %1494 = vmatprep.subr.mxu0 0.0
    %1495 = vmatpush1.msra.mxu0 0.0
    %1496 = vmatprep.subr.mxu0 0.0
    %1497 = vmatpush1.msra.mxu0 0.0
    %1498 = vmatprep.subr.mxu0 0.0
    %1499 = vmatpush1.msra.mxu0 0.0
    %1500 = vmatprep.subr.mxu0 0.0
    %1501 = vmatpush1.msra.mxu0 0.0
    %1502 = vmatprep.subr.mxu0 0.0
    %1503 = vmatpush1.msra.mxu0 0.0
    %1504 = vmatprep.subr.mxu0 0.0
    %1505 = vmatpush1.msra.mxu0 0.0
    %1506 = vmatprep.subr.mxu0 0.0
    %1507 = vmatpush1.msra.mxu0 0.0
    %1508 = vmatprep.subr.mxu0 0.0
    %1509 = vmatpush1.msra.mxu0 0.0
    %1510 = vmatprep.subr.mxu0 0.0
    %1511 = vmatpush1.msra.mxu0 0.0
    %1512 = vmatprep.subr.mxu0 0.0
    %1513 = vmatpush1.msra.mxu0 0.0
    %1514 = vmatprep.subr.mxu0 0.0
    %1515 = vmatpush1.msra.mxu0 0.0
    %1516 = vmatprep.subr.mxu0 0.0
    %1517 = vmatpush1.msra.mxu0 0.0
    %1518 = vmatprep.subr.mxu0 0.0
    %1519 = vmatpush1.msra.mxu0 0.0
    %1520 = vmatprep.subr.mxu0 0.0
    %1521 = vmatpush1.msra.mxu0 0.0
    %1522 = vmatprep.subr.mxu0 0.0
    %1523 = vmatpush1.msra.mxu0 0.0
    %1524 = vmatprep.subr.mxu0 0.0
    %1525 = vmatpush1.msra.mxu0 0.0
    %1526 = vmatprep.subr.mxu0 0.0
    %1527 = vmatpush1.msra.mxu0 0.0
    %1528 = vmatprep.subr.mxu0 0.0
    %1529 = vmatpush1.msra.mxu0 0.0
    %1530 = vmatprep.subr.mxu0 0.0
    %1531 = vmatpush1.msra.mxu0 0.0
    %1532 = vmatprep.subr.mxu0 0.0
    %1533 = vmatpush1.msra.mxu0 0.0
    %1534 = vmatprep.subr.mxu0 0.0
    %1535 = vmatpush1.msra.mxu0 0.0
    %1536 = vmatprep.mubr.f32.mxu0 0.0
    %1537 = vmatmul.mubr.f32.gmra.mrb[0].mxu0 %v1399
    %v1538 = vpop.f32.mrb[0].mxu0
    %v1539 = vadd.f32 0.0, %v1538
    %v1540 = vpop.f32.mrb[0].mxu0
    %v1541 = vadd.f32 0.0, %v1540
    %1542 = vdwg.mxu0
    %v1543 = vadd.f32 %v1385, %v1468
    %v1544 = vadd.f32 %v1386, %v1470
    %v1545 = vadd.f32 %v1387, %v1539
    %v1546 = vadd.f32 %v1388, %v1541
    %1547 = vrot.lane.b32.xlu0 %v526, 127
    %v1548 = vpop.permute.xlu0 %1547
    %1549 = vrot.lane.b32.xlu0 %v527, 127
    %v1550 = vpop.permute.xlu0 %1549
    %1551 = vrot.lane.b32.xlu0 %v528, 127
    %v1552 = vpop.permute.xlu0 %1551
    %1553 = vrot.lane.b32.xlu0 %v529, 127
    %v1554 = vpop.permute.xlu0 %1553
    %v1555 = vsel %vm213, %v1552, %v1554
    %v1556 = vsel %vm213, %v1550, %v1552
    %v1557 = vsel %vm213, %v1548, %v1550
    %v1558 = vsel %vm213, %v1554, %v1548
    %v1559 = vld [vmem:[#allocation6 + $0xa0] sm:$0xff]
    %v1560 = vld [vmem:[#allocation6 + $0xa8] sm:$0xff]
    %v1561 = vld [vmem:[#allocation6 + $0xb0] sm:$0xff]
    %v1562 = vld [vmem:[#allocation6 + $0xb8] sm:$0xff]
    %v1563 = vmul.f32 %v1557, %v1559
    %v1564 = vmul.f32 %v1556, %v1560
    %v1565 = vmul.f32 %v1555, %v1561
    %v1566 = vmul.f32 %v1558, %v1562
    %1567 = vrot.lane.b32.xlu0 %v530, 16
    %v1568 = vpop.permute.xlu0 %1567
    %v1569 = vsel %vm590, %v1568, 0
    %1571 = vmatprep.subr.mxu0 %v1564
    %1572 = vmatpush1.msra.mxu0 %v1563
    %1573 = vmatprep.subr.mxu0 0.0
    %1574 = vmatpush1.msra.mxu0 0.0
    %1575 = vmatprep.subr.mxu0 0.0
    %1576 = vmatpush1.msra.mxu0 0.0
    %1577 = vmatprep.subr.mxu0 0.0
    %1578 = vmatpush1.msra.mxu0 0.0
    %1579 = vmatprep.subr.mxu0 0.0
    %1580 = vmatpush1.msra.mxu0 0.0
    %1581 = vmatprep.subr.mxu0 0.0
    %1582 = vmatpush1.msra.mxu0 0.0
    %1583 = vmatprep.subr.mxu0 0.0
    %1584 = vmatpush1.msra.mxu0 0.0
    %1585 = vmatprep.subr.mxu0 0.0
    %1586 = vmatpush1.msra.mxu0 0.0
    %1587 = vmatprep.subr.mxu0 0.0
    %1588 = vmatpush1.msra.mxu0 0.0
    %1589 = vmatprep.subr.mxu0 0.0
    %1590 = vmatpush1.msra.mxu0 0.0
    %1591 = vmatprep.subr.mxu0 0.0
    %1592 = vmatpush1.msra.mxu0 0.0
    %1593 = vmatprep.subr.mxu0 0.0
    %1594 = vmatpush1.msra.mxu0 0.0
    %1595 = vmatprep.subr.mxu0 0.0
    %1596 = vmatpush1.msra.mxu0 0.0
    %1597 = vmatprep.subr.mxu0 0.0
    %1598 = vmatpush1.msra.mxu0 0.0
    %1599 = vmatprep.subr.mxu0 0.0
    %1600 = vmatpush1.msra.mxu0 0.0
    %1601 = vmatprep.subr.mxu0 0.0
    %1602 = vmatpush1.msra.mxu0 0.0
    %1603 = vmatprep.subr.mxu0 0.0
    %1604 = vmatpush1.msra.mxu0 0.0
    %1605 = vmatprep.subr.mxu0 0.0
    %1606 = vmatpush1.msra.mxu0 0.0
    %1607 = vmatprep.subr.mxu0 0.0
    %1608 = vmatpush1.msra.mxu0 0.0
    %1609 = vmatprep.subr.mxu0 0.0
    %1610 = vmatpush1.msra.mxu0 0.0
    %1611 = vmatprep.subr.mxu0 0.0
    %1612 = vmatpush1.msra.mxu0 0.0
    %1613 = vmatprep.subr.mxu0 0.0
    %1614 = vmatpush1.msra.mxu0 0.0
    %1615 = vmatprep.subr.mxu0 0.0
    %1616 = vmatpush1.msra.mxu0 0.0
    %1617 = vmatprep.subr.mxu0 0.0
    %1618 = vmatpush1.msra.mxu0 0.0
    %1619 = vmatprep.subr.mxu0 0.0
    %1620 = vmatpush1.msra.mxu0 0.0
    %1621 = vmatprep.subr.mxu0 0.0
    %1622 = vmatpush1.msra.mxu0 0.0
    %1623 = vmatprep.subr.mxu0 0.0
    %1624 = vmatpush1.msra.mxu0 0.0
    %1625 = vmatprep.subr.mxu0 0.0
    %1626 = vmatpush1.msra.mxu0 0.0
    %1627 = vmatprep.subr.mxu0 0.0
    %1628 = vmatpush1.msra.mxu0 0.0
    %1629 = vmatprep.subr.mxu0 0.0
    %1630 = vmatpush1.msra.mxu0 0.0
    %1631 = vmatprep.subr.mxu0 0.0
    %1632 = vmatpush1.msra.mxu0 0.0
    %1633 = vmatprep.subr.mxu0 0.0
    %1634 = vmatpush1.msra.mxu0 0.0
    %1635 = vmatprep.mubr.f32.mxu0 0.0
    %1636 = vmatmul.mubr.f32.gmra.mrb[0].mxu0 %v1569
    %v1637 = vpop.f32.mrb[0].mxu0
    %v1638 = vadd.f32 0.0, %v1637
    %v1639 = vpop.f32.mrb[0].mxu0
    %v1640 = vadd.f32 0.0, %v1639
    %1641 = vdwg.mxu0
    %1642 = vmatprep.subr.mxu0 %v1566
    %1643 = vmatpush1.msra.mxu0 %v1565
    %1644 = vmatprep.subr.mxu0 0.0
    %1645 = vmatpush1.msra.mxu0 0.0
    %1646 = vmatprep.subr.mxu0 0.0
    %1647 = vmatpush1.msra.mxu0 0.0
    %1648 = vmatprep.subr.mxu0 0.0
    %1649 = vmatpush1.msra.mxu0 0.0
    %1650 = vmatprep.subr.mxu0 0.0
    %1651 = vmatpush1.msra.mxu0 0.0
    %1652 = vmatprep.subr.mxu0 0.0
    %1653 = vmatpush1.msra.mxu0 0.0
    %1654 = vmatprep.subr.mxu0 0.0
    %1655 = vmatpush1.msra.mxu0 0.0
    %1656 = vmatprep.subr.mxu0 0.0
    %1657 = vmatpush1.msra.mxu0 0.0
    %1658 = vmatprep.subr.mxu0 0.0
    %1659 = vmatpush1.msra.mxu0 0.0
    %1660 = vmatprep.subr.mxu0 0.0
    %1661 = vmatpush1.msra.mxu0 0.0
    %1662 = vmatprep.subr.mxu0 0.0
    %1663 = vmatpush1.msra.mxu0 0.0
    %1664 = vmatprep.subr.mxu0 0.0
    %1665 = vmatpush1.msra.mxu0 0.0
    %1666 = vmatprep.subr.mxu0 0.0
    %1667 = vmatpush1.msra.mxu0 0.0
    %1668 = vmatprep.subr.mxu0 0.0
    %1669 = vmatpush1.msra.mxu0 0.0
    %1670 = vmatprep.subr.mxu0 0.0
    %1671 = vmatpush1.msra.mxu0 0.0
    %1672 = vmatprep.subr.mxu0 0.0
    %1673 = vmatpush1.msra.mxu0 0.0
    %1674 = vmatprep.subr.mxu0 0.0
    %1675 = vmatpush1.msra.mxu0 0.0
    %1676 = vmatprep.subr.mxu0 0.0
    %1677 = vmatpush1.msra.mxu0 0.0
    %1678 = vmatprep.subr.mxu0 0.0
    %1679 = vmatpush1.msra.mxu0 0.0
    %1680 = vmatprep.subr.mxu0 0.0
    %1681 = vmatpush1.msra.mxu0 0.0
    %1682 = vmatprep.subr.mxu0 0.0
    %1683 = vmatpush1.msra.mxu0 0.0
    %1684 = vmatprep.subr.mxu0 0.0
    %1685 = vmatpush1.msra.mxu0 0.0
    %1686 = vmatprep.subr.mxu0 0.0
    %1687 = vmatpush1.msra.mxu0 0.0
    %1688 = vmatprep.subr.mxu0 0.0
    %1689 = vmatpush1.msra.mxu0 0.0
    %1690 = vmatprep.subr.mxu0 0.0
    %1691 = vmatpush1.msra.mxu0 0.0
    %1692 = vmatprep.subr.mxu0 0.0
    %1693 = vmatpush1.msra.mxu0 0.0
    %1694 = vmatprep.subr.mxu0 0.0
    %1695 = vmatpush1.msra.mxu0 0.0
    %1696 = vmatprep.subr.mxu0 0.0
    %1697 = vmatpush1.msra.mxu0 0.0
    %1698 = vmatprep.subr.mxu0 0.0
    %1699 = vmatpush1.msra.mxu0 0.0
    %1700 = vmatprep.subr.mxu0 0.0
    %1701 = vmatpush1.msra.mxu0 0.0
    %1702 = vmatprep.subr.mxu0 0.0
    %1703 = vmatpush1.msra.mxu0 0.0
    %1704 = vmatprep.subr.mxu0 0.0
    %1705 = vmatpush1.msra.mxu0 0.0
    %1706 = vmatprep.mubr.f32.mxu0 0.0
    %1707 = vmatmul.mubr.f32.gmra.mrb[0].mxu0 %v1569
    %v1708 = vpop.f32.mrb[0].mxu0
    %v1709 = vadd.f32 0.0, %v1708
    %v1710 = vpop.f32.mrb[0].mxu0
    %v1711 = vadd.f32 0.0, %v1710
    %1712 = vdwg.mxu0
    %v1713 = vadd.f32 %v1543, %v1638
    %v1714 = vadd.f32 %v1544, %v1640
    %v1715 = vadd.f32 %v1545, %v1709
    %v1716 = vadd.f32 %v1546, %v1711
    %1717 = vrot.lane.b32.xlu0 %v526, 113
    %v1718 = vpop.permute.xlu0 %1717
    %1719 = vrot.lane.b32.xlu0 %v527, 113
    %v1720 = vpop.permute.xlu0 %1719
    %1721 = vrot.lane.b32.xlu0 %v528, 113
    %v1722 = vpop.permute.xlu0 %1721
    %1723 = vrot.lane.b32.xlu0 %v529, 113
    %v1724 = vpop.permute.xlu0 %1723
    %v1725 = vsel %vm238, %v1722, %v1724
    %v1726 = vsel %vm238, %v1720, %v1722
    %v1727 = vsel %vm238, %v1718, %v1720
    %v1728 = vsel %vm238, %v1724, %v1718
    %v1729 = vld [vmem:[#allocation6 + $0xc0] sm:$0xff]
    %v1730 = vld [vmem:[#allocation6 + $0xc8] sm:$0xff]
    %v1731 = vld [vmem:[#allocation6 + $0xd0] sm:$0xff]
    %v1732 = vld [vmem:[#allocation6 + $0xd8] sm:$0xff]
    %v1733 = vmul.f32 %v1727, %v1729
    %v1734 = vmul.f32 %v1726, %v1730
    %v1735 = vmul.f32 %v1725, %v1731
    %v1736 = vmul.f32 %v1728, %v1732
    %1737 = vrot.lane.b32.xlu0 %v530, 8
    %v1738 = vpop.permute.xlu0 %1737
    %v1739 = vsel %vm590, %v1738, 0
    %1741 = vmatprep.subr.mxu0 %v1734
    %1742 = vmatpush1.msra.mxu0 %v1733
    %1743 = vmatprep.subr.mxu0 0.0
    %1744 = vmatpush1.msra.mxu0 0.0
    %1745 = vmatprep.subr.mxu0 0.0
    %1746 = vmatpush1.msra.mxu0 0.0
    %1747 = vmatprep.subr.mxu0 0.0
    %1748 = vmatpush1.msra.mxu0 0.0
    %1749 = vmatprep.subr.mxu0 0.0
    %1750 = vmatpush1.msra.mxu0 0.0
    %1751 = vmatprep.subr.mxu0 0.0
    %1752 = vmatpush1.msra.mxu0 0.0
    %1753 = vmatprep.subr.mxu0 0.0
    %1754 = vmatpush1.msra.mxu0 0.0
    %1755 = vmatprep.subr.mxu0 0.0
    %1756 = vmatpush1.msra.mxu0 0.0
    %1757 = vmatprep.subr.mxu0 0.0
    %1758 = vmatpush1.msra.mxu0 0.0
    %1759 = vmatprep.subr.mxu0 0.0
    %1760 = vmatpush1.msra.mxu0 0.0
    %1761 = vmatprep.subr.mxu0 0.0
    %1762 = vmatpush1.msra.mxu0 0.0
    %1763 = vmatprep.subr.mxu0 0.0
    %1764 = vmatpush1.msra.mxu0 0.0
    %1765 = vmatprep.subr.mxu0 0.0
    %1766 = vmatpush1.msra.mxu0 0.0
    %1767 = vmatprep.subr.mxu0 0.0
    %1768 = vmatpush1.msra.mxu0 0.0
    %1769 = vmatprep.subr.mxu0 0.0
    %1770 = vmatpush1.msra.mxu0 0.0
    %1771 = vmatprep.subr.mxu0 0.0
    %1772 = vmatpush1.msra.mxu0 0.0
    %1773 = vmatprep.subr.mxu0 0.0
    %1774 = vmatpush1.msra.mxu0 0.0
    %1775 = vmatprep.subr.mxu0 0.0
    %1776 = vmatpush1.msra.mxu0 0.0
    %1777 = vmatprep.subr.mxu0 0.0
    %1778 = vmatpush1.msra.mxu0 0.0
    %1779 = vmatprep.subr.mxu0 0.0
    %1780 = vmatpush1.msra.mxu0 0.0
    %1781 = vmatprep.subr.mxu0 0.0
    %1782 = vmatpush1.msra.mxu0 0.0
    %1783 = vmatprep.subr.mxu0 0.0
    %1784 = vmatpush1.msra.mxu0 0.0
    %1785 = vmatprep.subr.mxu0 0.0
    %1786 = vmatpush1.msra.mxu0 0.0
    %1787 = vmatprep.subr.mxu0 0.0
    %1788 = vmatpush1.msra.mxu0 0.0
    %1789 = vmatprep.subr.mxu0 0.0
    %1790 = vmatpush1.msra.mxu0 0.0
    %1791 = vmatprep.subr.mxu0 0.0
    %1792 = vmatpush1.msra.mxu0 0.0
    %1793 = vmatprep.subr.mxu0 0.0
    %1794 = vmatpush1.msra.mxu0 0.0
    %1795 = vmatprep.subr.mxu0 0.0
    %1796 = vmatpush1.msra.mxu0 0.0
    %1797 = vmatprep.subr.mxu0 0.0
    %1798 = vmatpush1.msra.mxu0 0.0
    %1799 = vmatprep.subr.mxu0 0.0
    %1800 = vmatpush1.msra.mxu0 0.0
    %1801 = vmatprep.subr.mxu0 0.0
    %1802 = vmatpush1.msra.mxu0 0.0
    %1803 = vmatprep.subr.mxu0 0.0
    %1804 = vmatpush1.msra.mxu0 0.0
    %1805 = vmatprep.mubr.f32.mxu0 0.0
    %1806 = vmatmul.mubr.f32.gmra.mrb[0].mxu0 %v1739
    %v1807 = vpop.f32.mrb[0].mxu0
    %v1808 = vadd.f32 0.0, %v1807
    %v1809 = vpop.f32.mrb[0].mxu0
    %v1810 = vadd.f32 0.0, %v1809
    %1811 = vdwg.mxu0
    %1812 = vmatprep.subr.mxu0 %v1736
    %1813 = vmatpush1.msra.mxu0 %v1735
    %1814 = vmatprep.subr.mxu0 0.0
    %1815 = vmatpush1.msra.mxu0 0.0
    %1816 = vmatprep.subr.mxu0 0.0
    %1817 = vmatpush1.msra.mxu0 0.0
    %1818 = vmatprep.subr.mxu0 0.0
    %1819 = vmatpush1.msra.mxu0 0.0
    %1820 = vmatprep.subr.mxu0 0.0
    %1821 = vmatpush1.msra.mxu0 0.0
    %1822 = vmatprep.subr.mxu0 0.0
    %1823 = vmatpush1.msra.mxu0 0.0
    %1824 = vmatprep.subr.mxu0 0.0
    %1825 = vmatpush1.msra.mxu0 0.0
    %1826 = vmatprep.subr.mxu0 0.0
    %1827 = vmatpush1.msra.mxu0 0.0
    %1828 = vmatprep.subr.mxu0 0.0
    %1829 = vmatpush1.msra.mxu0 0.0
    %1830 = vmatprep.subr.mxu0 0.0
    %1831 = vmatpush1.msra.mxu0 0.0
    %1832 = vmatprep.subr.mxu0 0.0
    %1833 = vmatpush1.msra.mxu0 0.0
    %1834 = vmatprep.subr.mxu0 0.0
    %1835 = vmatpush1.msra.mxu0 0.0
    %1836 = vmatprep.subr.mxu0 0.0
    %1837 = vmatpush1.msra.mxu0 0.0
    %1838 = vmatprep.subr.mxu0 0.0
    %1839 = vmatpush1.msra.mxu0 0.0
    %1840 = vmatprep.subr.mxu0 0.0
    %1841 = vmatpush1.msra.mxu0 0.0
    %1842 = vmatprep.subr.mxu0 0.0
    %1843 = vmatpush1.msra.mxu0 0.0
    %1844 = vmatprep.subr.mxu0 0.0
    %1845 = vmatpush1.msra.mxu0 0.0
    %1846 = vmatprep.subr.mxu0 0.0
    %1847 = vmatpush1.msra.mxu0 0.0
    %1848 = vmatprep.subr.mxu0 0.0
    %1849 = vmatpush1.msra.mxu0 0.0
    %1850 = vmatprep.subr.mxu0 0.0
    %1851 = vmatpush1.msra.mxu0 0.0
    %1852 = vmatprep.subr.mxu0 0.0
    %1853 = vmatpush1.msra.mxu0 0.0
    %1854 = vmatprep.subr.mxu0 0.0
    %1855 = vmatpush1.msra.mxu0 0.0
    %1856 = vmatprep.subr.mxu0 0.0
    %1857 = vmatpush1.msra.mxu0 0.0
    %1858 = vmatprep.subr.mxu0 0.0
    %1859 = vmatpush1.msra.mxu0 0.0
    %1860 = vmatprep.subr.mxu0 0.0
    %1861 = vmatpush1.msra.mxu0 0.0
    %1862 = vmatprep.subr.mxu0 0.0
    %1863 = vmatpush1.msra.mxu0 0.0
    %1864 = vmatprep.subr.mxu0 0.0
    %1865 = vmatpush1.msra.mxu0 0.0
    %1866 = vmatprep.subr.mxu0 0.0
    %1867 = vmatpush1.msra.mxu0 0.0
    %1868 = vmatprep.subr.mxu0 0.0
    %1869 = vmatpush1.msra.mxu0 0.0
    %1870 = vmatprep.subr.mxu0 0.0
    %1871 = vmatpush1.msra.mxu0 0.0
    %1872 = vmatprep.subr.mxu0 0.0
    %1873 = vmatpush1.msra.mxu0 0.0
    %1874 = vmatprep.subr.mxu0 0.0
    %1875 = vmatpush1.msra.mxu0 0.0
    %1876 = vmatprep.mubr.f32.mxu0 0.0
    %1877 = vmatmul.mubr.f32.gmra.mrb[0].mxu0 %v1739
    %v1878 = vpop.f32.mrb[0].mxu0
    %v1879 = vadd.f32 0.0, %v1878
    %v1880 = vpop.f32.mrb[0].mxu0
    %v1881 = vadd.f32 0.0, %v1880
    %1882 = vdwg.mxu0
    %v1883 = vadd.f32 %v1713, %v1808
    %v1884 = vadd.f32 %v1714, %v1810
    %v1885 = vadd.f32 %v1715, %v1879
    %v1886 = vadd.f32 %v1716, %v1881
    %1887 = vrot.lane.b32.xlu0 %v526, 112
    %v1888 = vpop.permute.xlu0 %1887
    %1889 = vrot.lane.b32.xlu0 %v527, 112
    %v1890 = vpop.permute.xlu0 %1889
    %1891 = vrot.lane.b32.xlu0 %v528, 112
    %v1892 = vpop.permute.xlu0 %1891
    %1893 = vrot.lane.b32.xlu0 %v529, 112
    %v1894 = vpop.permute.xlu0 %1893
    %v1895 = vsel %vm263, %v1892, %v1894
    %v1896 = vsel %vm263, %v1890, %v1892
    %v1897 = vsel %vm263, %v1888, %v1890
    %v1898 = vsel %vm263, %v1894, %v1888
    %v1899 = vld [vmem:[#allocation6 + $0xe0] sm:$0xff]
    %v1900 = vld [vmem:[#allocation6 + $0xe8] sm:$0xff]
    %v1901 = vld [vmem:[#allocation6 + $0xf0] sm:$0xff]
    %v1902 = vld [vmem:[#allocation6 + $0xf8] sm:$0xff]
    %v1903 = vmul.f32 %v1897, %v1899
    %v1904 = vmul.f32 %v1896, %v1900
    %v1905 = vmul.f32 %v1895, %v1901
    %v1906 = vmul.f32 %v1898, %v1902
    %v1907 = vld [vmem:[%s3 + $0x8] sm:$0xff]
    %v1909 = vsel %vm590, %v1907, 0
    %1911 = vmatprep.subr.mxu0 %v1904
    %1912 = vmatpush1.msra.mxu0 %v1903
    %1913 = vmatprep.subr.mxu0 0.0
    %1914 = vmatpush1.msra.mxu0 0.0
    %1915 = vmatprep.subr.mxu0 0.0
    %1916 = vmatpush1.msra.mxu0 0.0
    %1917 = vmatprep.subr.mxu0 0.0
    %1918 = vmatpush1.msra.mxu0 0.0
    %1919 = vmatprep.subr.mxu0 0.0
    %1920 = vmatpush1.msra.mxu0 0.0
    %1921 = vmatprep.subr.mxu0 0.0
    %1922 = vmatpush1.msra.mxu0 0.0
    %1923 = vmatprep.subr.mxu0 0.0
    %1924 = vmatpush1.msra.mxu0 0.0
    %1925 = vmatprep.subr.mxu0 0.0
    %1926 = vmatpush1.msra.mxu0 0.0
    %1927 = vmatprep.subr.mxu0 0.0
    %1928 = vmatpush1.msra.mxu0 0.0
    %1929 = vmatprep.subr.mxu0 0.0
    %1930 = vmatpush1.msra.mxu0 0.0
    %1931 = vmatprep.subr.mxu0 0.0
    %1932 = vmatpush1.msra.mxu0 0.0
    %1933 = vmatprep.subr.mxu0 0.0
    %1934 = vmatpush1.msra.mxu0 0.0
    %1935 = vmatprep.subr.mxu0 0.0
    %1936 = vmatpush1.msra.mxu0 0.0
    %1937 = vmatprep.subr.mxu0 0.0
    %1938 = vmatpush1.msra.mxu0 0.0
    %1939 = vmatprep.subr.mxu0 0.0
    %1940 = vmatpush1.msra.mxu0 0.0
    %1941 = vmatprep.subr.mxu0 0.0
    %1942 = vmatpush1.msra.mxu0 0.0
    %1943 = vmatprep.subr.mxu0 0.0
    %1944 = vmatpush1.msra.mxu0 0.0
    %1945 = vmatprep.subr.mxu0 0.0
    %1946 = vmatpush1.msra.mxu0 0.0
    %1947 = vmatprep.subr.mxu0 0.0
    %1948 = vmatpush1.msra.mxu0 0.0
    %1949 = vmatprep.subr.mxu0 0.0
    %1950 = vmatpush1.msra.mxu0 0.0
    %1951 = vmatprep.subr.mxu0 0.0
    %1952 = vmatpush1.msra.mxu0 0.0
    %1953 = vmatprep.subr.mxu0 0.0
    %1954 = vmatpush1.msra.mxu0 0.0
    %1955 = vmatprep.subr.mxu0 0.0
    %1956 = vmatpush1.msra.mxu0 0.0
    %1957 = vmatprep.subr.mxu0 0.0
    %1958 = vmatpush1.msra.mxu0 0.0
    %1959 = vmatprep.subr.mxu0 0.0
    %1960 = vmatpush1.msra.mxu0 0.0
    %1961 = vmatprep.subr.mxu0 0.0
    %1962 = vmatpush1.msra.mxu0 0.0
    %1963 = vmatprep.subr.mxu0 0.0
    %1964 = vmatpush1.msra.mxu0 0.0
    %1965 = vmatprep.subr.mxu0 0.0
    %1966 = vmatpush1.msra.mxu0 0.0
    %1967 = vmatprep.subr.mxu0 0.0
    %1968 = vmatpush1.msra.mxu0 0.0
    %1969 = vmatprep.subr.mxu0 0.0
    %1970 = vmatpush1.msra.mxu0 0.0
    %1971 = vmatprep.subr.mxu0 0.0
    %1972 = vmatpush1.msra.mxu0 0.0
    %1973 = vmatprep.subr.mxu0 0.0
    %1974 = vmatpush1.msra.mxu0 0.0
    %1975 = vmatprep.mubr.f32.mxu0 0.0
    %1976 = vmatmul.mubr.f32.gmra.mrb[0].mxu0 %v1909
    %v1977 = vpop.f32.mrb[0].mxu0
    %v1978 = vadd.f32 0.0, %v1977
    %v1979 = vpop.f32.mrb[0].mxu0
    %v1980 = vadd.f32 0.0, %v1979
    %1981 = vdwg.mxu0
    %1982 = vmatprep.subr.mxu0 %v1906
    %1983 = vmatpush1.msra.mxu0 %v1905
    %1984 = vmatprep.subr.mxu0 0.0
    %1985 = vmatpush1.msra.mxu0 0.0
    %1986 = vmatprep.subr.mxu0 0.0
    %1987 = vmatpush1.msra.mxu0 0.0
    %1988 = vmatprep.subr.mxu0 0.0
    %1989 = vmatpush1.msra.mxu0 0.0
    %1990 = vmatprep.subr.mxu0 0.0
    %1991 = vmatpush1.msra.mxu0 0.0
    %1992 = vmatprep.subr.mxu0 0.0
    %1993 = vmatpush1.msra.mxu0 0.0
    %1994 = vmatprep.subr.mxu0 0.0
    %1995 = vmatpush1.msra.mxu0 0.0
    %1996 = vmatprep.subr.mxu0 0.0
    %1997 = vmatpush1.msra.mxu0 0.0
    %1998 = vmatprep.subr.mxu0 0.0
    %1999 = vmatpush1.msra.mxu0 0.0
    %2000 = vmatprep.subr.mxu0 0.0
    %2001 = vmatpush1.msra.mxu0 0.0
    %2002 = vmatprep.subr.mxu0 0.0
    %2003 = vmatpush1.msra.mxu0 0.0
    %2004 = vmatprep.subr.mxu0 0.0
    %2005 = vmatpush1.msra.mxu0 0.0
    %2006 = vmatprep.subr.mxu0 0.0
    %2007 = vmatpush1.msra.mxu0 0.0
    %2008 = vmatprep.subr.mxu0 0.0
    %2009 = vmatpush1.msra.mxu0 0.0
    %2010 = vmatprep.subr.mxu0 0.0
    %2011 = vmatpush1.msra.mxu0 0.0
    %2012 = vmatprep.subr.mxu0 0.0
    %2013 = vmatpush1.msra.mxu0 0.0
    %2014 = vmatprep.subr.mxu0 0.0
    %2015 = vmatpush1.msra.mxu0 0.0
    %2016 = vmatprep.subr.mxu0 0.0
    %2017 = vmatpush1.msra.mxu0 0.0
    %2018 = vmatprep.subr.mxu0 0.0
    %2019 = vmatpush1.msra.mxu0 0.0
    %2020 = vmatprep.subr.mxu0 0.0
    %2021 = vmatpush1.msra.mxu0 0.0
    %2022 = vmatprep.subr.mxu0 0.0
    %2023 = vmatpush1.msra.mxu0 0.0
    %2024 = vmatprep.subr.mxu0 0.0
    %2025 = vmatpush1.msra.mxu0 0.0
    %2026 = vmatprep.subr.mxu0 0.0
    %2027 = vmatpush1.msra.mxu0 0.0
    %2028 = vmatprep.subr.mxu0 0.0
    %2029 = vmatpush1.msra.mxu0 0.0
    %2030 = vmatprep.subr.mxu0 0.0
    %2031 = vmatpush1.msra.mxu0 0.0
    %2032 = vmatprep.subr.mxu0 0.0
    %2033 = vmatpush1.msra.mxu0 0.0
    %2034 = vmatprep.subr.mxu0 0.0
    %2035 = vmatpush1.msra.mxu0 0.0
    %2036 = vmatprep.subr.mxu0 0.0
    %2037 = vmatpush1.msra.mxu0 0.0
    %2038 = vmatprep.subr.mxu0 0.0
    %2039 = vmatpush1.msra.mxu0 0.0
    %2040 = vmatprep.subr.mxu0 0.0
    %2041 = vmatpush1.msra.mxu0 0.0
    %2042 = vmatprep.subr.mxu0 0.0
    %2043 = vmatpush1.msra.mxu0 0.0
    %2044 = vmatprep.subr.mxu0 0.0
    %2045 = vmatpush1.msra.mxu0 0.0
    %2046 = vmatprep.mubr.f32.mxu0 0.0
    %2047 = vmatmul.mubr.f32.gmra.mrb[0].mxu0 %v1909
    %v2048 = vpop.f32.mrb[0].mxu0
    %v2049 = vadd.f32 0.0, %v2048
    %v2050 = vpop.f32.mrb[0].mxu0
    %v2051 = vadd.f32 0.0, %v2050
    %2052 = vdwg.mxu0
    %v2053 = vadd.f32 %v1883, %v1978
    %v2054 = vadd.f32 %v1884, %v1980
    %v2055 = vadd.f32 %v1885, %v2049
    %v2056 = vadd.f32 %v1886, %v2051
    %2057 = vrot.lane.b32.xlu0 %v526, 111
    %v2058 = vpop.permute.xlu0 %2057
    %2059 = vrot.lane.b32.xlu0 %v527, 111
    %v2060 = vpop.permute.xlu0 %2059
    %2061 = vrot.lane.b32.xlu0 %v528, 111
    %v2062 = vpop.permute.xlu0 %2061
    %2063 = vrot.lane.b32.xlu0 %v529, 111
    %v2064 = vpop.permute.xlu0 %2063
    %v2065 = vsel %vm288, %v2062, %v2064
    %v2066 = vsel %vm288, %v2060, %v2062
    %v2067 = vsel %vm288, %v2058, %v2060
    %v2068 = vsel %vm288, %v2064, %v2058
    %v2069 = vld [vmem:[#allocation6 + $0x100] sm:$0xff]
    %v2070 = vld [vmem:[#allocation6 + $0x108] sm:$0xff]
    %v2071 = vld [vmem:[#allocation6 + $0x110] sm:$0xff]
    %v2072 = vld [vmem:[#allocation6 + $0x118] sm:$0xff]
    %v2073 = vmul.f32 %v2067, %v2069
    %v2074 = vmul.f32 %v2066, %v2070
    %v2075 = vmul.f32 %v2065, %v2071
    %v2076 = vmul.f32 %v2068, %v2072
    %2077 = vrot.lane.b32.xlu0 %v1907, 120
    %v2078 = vpop.permute.xlu0 %2077
    %v2079 = vsel %vm590, %v2078, 0
    %2081 = vmatprep.subr.mxu0 %v2074
    %2082 = vmatpush1.msra.mxu0 %v2073
    %2083 = vmatprep.subr.mxu0 0.0
    %2084 = vmatpush1.msra.mxu0 0.0
    %2085 = vmatprep.subr.mxu0 0.0
    %2086 = vmatpush1.msra.mxu0 0.0
    %2087 = vmatprep.subr.mxu0 0.0
    %2088 = vmatpush1.msra.mxu0 0.0
    %2089 = vmatprep.subr.mxu0 0.0
    %2090 = vmatpush1.msra.mxu0 0.0
    %2091 = vmatprep.subr.mxu0 0.0
    %2092 = vmatpush1.msra.mxu0 0.0
    %2093 = vmatprep.subr.mxu0 0.0
    %2094 = vmatpush1.msra.mxu0 0.0
    %2095 = vmatprep.subr.mxu0 0.0
    %2096 = vmatpush1.msra.mxu0 0.0
    %2097 = vmatprep.subr.mxu0 0.0
    %2098 = vmatpush1.msra.mxu0 0.0
    %2099 = vmatprep.subr.mxu0 0.0
    %2100 = vmatpush1.msra.mxu0 0.0
    %2101 = vmatprep.subr.mxu0 0.0
    %2102 = vmatpush1.msra.mxu0 0.0
    %2103 = vmatprep.subr.mxu0 0.0
    %2104 = vmatpush1.msra.mxu0 0.0
    %2105 = vmatprep.subr.mxu0 0.0
    %2106 = vmatpush1.msra.mxu0 0.0
    %2107 = vmatprep.subr.mxu0 0.0
    %2108 = vmatpush1.msra.mxu0 0.0
    %2109 = vmatprep.subr.mxu0 0.0
    %2110 = vmatpush1.msra.mxu0 0.0
    %2111 = vmatprep.subr.mxu0 0.0
    %2112 = vmatpush1.msra.mxu0 0.0
    %2113 = vmatprep.subr.mxu0 0.0
    %2114 = vmatpush1.msra.mxu0 0.0
    %2115 = vmatprep.subr.mxu0 0.0
    %2116 = vmatpush1.msra.mxu0 0.0
    %2117 = vmatprep.subr.mxu0 0.0
    %2118 = vmatpush1.msra.mxu0 0.0
    %2119 = vmatprep.subr.mxu0 0.0
    %2120 = vmatpush1.msra.mxu0 0.0
    %2121 = vmatprep.subr.mxu0 0.0
    %2122 = vmatpush1.msra.mxu0 0.0
    %2123 = vmatprep.subr.mxu0 0.0
    %2124 = vmatpush1.msra.mxu0 0.0
    %2125 = vmatprep.subr.mxu0 0.0
    %2126 = vmatpush1.msra.mxu0 0.0
    %2127 = vmatprep.subr.mxu0 0.0
    %2128 = vmatpush1.msra.mxu0 0.0
    %2129 = vmatprep.subr.mxu0 0.0
    %2130 = vmatpush1.msra.mxu0 0.0
    %2131 = vmatprep.subr.mxu0 0.0
    %2132 = vmatpush1.msra.mxu0 0.0
    %2133 = vmatprep.subr.mxu0 0.0
    %2134 = vmatpush1.msra.mxu0 0.0
    %2135 = vmatprep.subr.mxu0 0.0
    %2136 = vmatpush1.msra.mxu0 0.0
    %2137 = vmatprep.subr.mxu0 0.0
    %2138 = vmatpush1.msra.mxu0 0.0
    %2139 = vmatprep.subr.mxu0 0.0
    %2140 = vmatpush1.msra.mxu0 0.0
    %2141 = vmatprep.subr.mxu0 0.0
    %2142 = vmatpush1.msra.mxu0 0.0
    %2143 = vmatprep.subr.mxu0 0.0
    %2144 = vmatpush1.msra.mxu0 0.0
    %2145 = vmatprep.mubr.f32.mxu0 0.0
    %2146 = vmatmul.mubr.f32.gmra.mrb[0].mxu0 %v2079
    %v2147 = vpop.f32.mrb[0].mxu0
    %v2148 = vadd.f32 0.0, %v2147
    %v2149 = vpop.f32.mrb[0].mxu0
    %v2150 = vadd.f32 0.0, %v2149
    %2151 = vdwg.mxu0
    %2152 = vmatprep.subr.mxu0 %v2076
    %2153 = vmatpush1.msra.mxu0 %v2075
    %2154 = vmatprep.subr.mxu0 0.0
    %2155 = vmatpush1.msra.mxu0 0.0
    %2156 = vmatprep.subr.mxu0 0.0
    %2157 = vmatpush1.msra.mxu0 0.0
    %2158 = vmatprep.subr.mxu0 0.0
    %2159 = vmatpush1.msra.mxu0 0.0
    %2160 = vmatprep.subr.mxu0 0.0
    %2161 = vmatpush1.msra.mxu0 0.0
    %2162 = vmatprep.subr.mxu0 0.0
    %2163 = vmatpush1.msra.mxu0 0.0
    %2164 = vmatprep.subr.mxu0 0.0
    %2165 = vmatpush1.msra.mxu0 0.0
    %2166 = vmatprep.subr.mxu0 0.0
    %2167 = vmatpush1.msra.mxu0 0.0
    %2168 = vmatprep.subr.mxu0 0.0
    %2169 = vmatpush1.msra.mxu0 0.0
    %2170 = vmatprep.subr.mxu0 0.0
    %2171 = vmatpush1.msra.mxu0 0.0
    %2172 = vmatprep.subr.mxu0 0.0
    %2173 = vmatpush1.msra.mxu0 0.0
    %2174 = vmatprep.subr.mxu0 0.0
    %2175 = vmatpush1.msra.mxu0 0.0
    %2176 = vmatprep.subr.mxu0 0.0
    %2177 = vmatpush1.msra.mxu0 0.0
    %2178 = vmatprep.subr.mxu0 0.0
    %2179 = vmatpush1.msra.mxu0 0.0
    %2180 = vmatprep.subr.mxu0 0.0
    %2181 = vmatpush1.msra.mxu0 0.0
    %2182 = vmatprep.subr.mxu0 0.0
    %2183 = vmatpush1.msra.mxu0 0.0
    %2184 = vmatprep.subr.mxu0 0.0
    %2185 = vmatpush1.msra.mxu0 0.0
    %2186 = vmatprep.subr.mxu0 0.0
    %2187 = vmatpush1.msra.mxu0 0.0
    %2188 = vmatprep.subr.mxu0 0.0
    %2189 = vmatpush1.msra.mxu0 0.0
    %2190 = vmatprep.subr.mxu0 0.0
    %2191 = vmatpush1.msra.mxu0 0.0
    %2192 = vmatprep.subr.mxu0 0.0
    %2193 = vmatpush1.msra.mxu0 0.0
    %2194 = vmatprep.subr.mxu0 0.0
    %2195 = vmatpush1.msra.mxu0 0.0
    %2196 = vmatprep.subr.mxu0 0.0
    %2197 = vmatpush1.msra.mxu0 0.0
    %2198 = vmatprep.subr.mxu0 0.0
    %2199 = vmatpush1.msra.mxu0 0.0
    %2200 = vmatprep.subr.mxu0 0.0
    %2201 = vmatpush1.msra.mxu0 0.0
    %2202 = vmatprep.subr.mxu0 0.0
    %2203 = vmatpush1.msra.mxu0 0.0
    %2204 = vmatprep.subr.mxu0 0.0
    %2205 = vmatpush1.msra.mxu0 0.0
    %2206 = vmatprep.subr.mxu0 0.0
    %2207 = vmatpush1.msra.mxu0 0.0
    %2208 = vmatprep.subr.mxu0 0.0
    %2209 = vmatpush1.msra.mxu0 0.0
    %2210 = vmatprep.subr.mxu0 0.0
    %2211 = vmatpush1.msra.mxu0 0.0
    %2212 = vmatprep.subr.mxu0 0.0
    %2213 = vmatpush1.msra.mxu0 0.0
    %2214 = vmatprep.subr.mxu0 0.0
    %2215 = vmatpush1.msra.mxu0 0.0
    %2216 = vmatprep.mubr.f32.mxu0 0.0
    %2217 = vmatmul.mubr.f32.gmra.mrb[0].mxu0 %v2079
    %v2218 = vpop.f32.mrb[0].mxu0
    %v2219 = vadd.f32 0.0, %v2218
    %v2220 = vpop.f32.mrb[0].mxu0
    %v2221 = vadd.f32 0.0, %v2220
    %2222 = vdwg.mxu0
    %v2223 = vadd.f32 %v2053, %v2148
    %v2224 = vadd.f32 %v2054, %v2150
    %v2225 = vadd.f32 %v2055, %v2219
    %v2226 = vadd.f32 %v2056, %v2221
    %v2227 = vld [vmem:[%s5] sm:$0xff]
    %2229 = vset.pattern.permute.xlu0 0
    %2230 = vperm.xlu0 %2229, %v2227
    %v2231 = vpop.permute.xlu0 %2230
    %v2233 = vadd.f32 %v2223, %v2231
    %v2234 = vadd.f32 %v2224, %v2231
    %v2235 = vadd.f32 %v2225, %v2231
    %v2236 = vadd.f32 %v2226, %v2231
    %2237 = vst [vmem:[#allocation8 + $0x40] sm:$0xff] %v2233
    %2238 = vst [vmem:[#allocation8 + $0x48] sm:$0xff] %v2234
    %2239 = vst [vmem:[#allocation8 + $0x50] sm:$0xff] %v2235
    %2240 = vst [vmem:[#allocation8 + $0x58] sm:$0xff] %v2236
    // Predicated region
    $region34: #{tpu_custom_call.1} parent=1 // pred_check
      _
    $region35: #{tpu_custom_call.1} parent=1 // pred_check_branch
      %2242 = sbr.rel (0) target = $region37
    $region36: #{tpu_custom_call.1} parent=1 // pred_region
      %s2244 = ssub.s32 1536, 1536
      %2245 = vsyncadd [#allocation5], %s2244
      %s2246 = sshll.u32 [#allocation8], 4
      %s2247 = int_to_ptr.vmem [resolvable:$true] %s2246
      %2252 = dma.vmem_to_hbm [thread:$0]  %s2247, 1536, %s6, [#allocation5], 512, 512, 32
    $region37: #{tpu_custom_call.1} parent=1 // pred_fallthru
      _
    // Predicated region
    $region38: #{tpu_custom_call.1} parent=1 // pred_check
      _
    $region39: #{tpu_custom_call.1} parent=1 // pred_check_branch
      %2254 = sbr.rel (0) target = $region41
    $region40: #{tpu_custom_call.1} parent=1 // pred_region
      %2255 = dma.done [#allocation5], 1536
    $region41: #{tpu_custom_call.1} parent=1 // pred_fallthru
      _
    %2256 = vsyncpa [#allocation4], 1
    %2257 = vsyncpa [#allocation7], 1
    %2258 = vsyncpa [#allocation5], 1

</llo_original>
